<compile_context>
chip_gen: v5e
topology: v5e:2x2
jax: 0.10.0
libtpu: 0.0.40
codegen_flags: <defaults>
</compile_context>

<pallas_src>
import math
import functools

import jax
import jax.numpy as jnp
from jax import lax
from jax.experimental import pallas as pl
from jax.experimental.pallas import tpu as pltpu


_VMEM_LIMIT = 32 * 1024 * 1024          # explicit scoped-VMEM budget (safe on v5e/v6e/v7x)
_LINEAR_VMEM_BUDGET = 24 * 1024 * 1024  # gate for the weight-panel-resident linear path


def _sublane_align(dtype):
    """Second-minor tile alignment: 8 rows (f32), 16 (bf16), 32 (int8/fp8)."""
    return max(8, 32 // jnp.dtype(dtype).itemsize)


def _pick_tile(dim, target, align):
    """Largest tile <= target that divides `dim` and is a multiple of `align`;
    falls back to the full dim (always a legal BlockSpec block)."""
    if dim <= target:
        return dim
    t = (target // align) * align
    while t >= align:
        if dim % t == 0:
            return t
        t -= align
    return dim


# ---------------------------------------------------------------------------
# Tiled linear: y = x @ W + b     x:(M,K)  W:(K,N)  b:(1,N)
# ---------------------------------------------------------------------------
def _linear_fullk_kernel(x_ref, w_ref, b_ref, o_ref):
    acc = jnp.dot(x_ref[...], w_ref[...], preferred_element_type=jnp.float32)
    o_ref[...] = (acc + b_ref[...].astype(jnp.float32)).astype(o_ref.dtype)


def _linear_kblocked_kernel(x_ref, w_ref, b_ref, o_ref, acc_ref):
    k = pl.program_id(2)

    @pl.when(k == 0)
    def _():
        acc_ref[...] = jnp.zeros_like(acc_ref)

    acc_ref[...] += jnp.dot(x_ref[...], w_ref[...],
                            preferred_element_type=jnp.float32)

    @pl.when(k == pl.num_programs(2) - 1)
    def _():
        o_ref[...] = (acc_ref[...] +
                      b_ref[...].astype(jnp.float32)).astype(o_ref.dtype)


def _linear(x, w, b):
    M, K = x.shape
    Kw, N = w.shape
    assert K == Kw
    itemsize = jnp.dtype(x.dtype).itemsize
    tm = _pick_tile(M, 512, _sublane_align(x.dtype))

    # Weight-panel-resident full-K path: N-tiles are the OUTER grid axis, so
    # each (K, tn) weight panel is DMA'd exactly once (resident across M tiles).
    # Gate on a double-buffered VMEM estimate so it fits every generation.
    tn = None
    for cand in [N] + [c for c in (1024, 512, 256, 128) if c < N and N % c == 0]:
        est = 2 * (tm * K + K * cand + cand + tm * cand) * itemsize
        if est <= _LINEAR_VMEM_BUDGET:
            tn = cand
            break

    if tn is not None:
        grid = (N // tn, M // tm)   # j outer, i inner -> W panel fetched once per j
        return pl.pallas_call(
            _linear_fullk_kernel,
            out_shape=jax.ShapeDtypeStruct((M, N), x.dtype),
            grid_spec=pltpu.PrefetchScalarGridSpec(
                num_scalar_prefetch=0,
                grid=grid,
                in_specs=[
                    pl.BlockSpec((tm, K), lambda j, i: (i, 0)),
                    pl.BlockSpec((K, tn), lambda j, i: (0, j)),
                    pl.BlockSpec((1, tn), lambda j, i: (0, j)),
                ],
                out_specs=pl.BlockSpec((tm, tn), lambda j, i: (i, j)),
            ),
            compiler_params=pltpu.CompilerParams(
                dimension_semantics=("parallel", "parallel"),
                vmem_limit_bytes=_VMEM_LIMIT),
        )(x, w, b)

    # Fallback for very large K: K-blocked accumulation (f32 scratch).
    tn = _pick_tile(N, 512, 128)
    tk = _pick_tile(K, 512, 128)
    grid = (M // tm, N // tn, K // tk)
    return pl.pallas_call(
        _linear_kblocked_kernel,
        out_shape=jax.ShapeDtypeStruct((M, N), x.dtype),
        grid_spec=pltpu.PrefetchScalarGridSpec(
            num_scalar_prefetch=0,
            grid=grid,
            in_specs=[
                pl.BlockSpec((tm, tk), lambda i, j, k: (i, k)),
                pl.BlockSpec((tk, tn), lambda i, j, k: (k, j)),
                pl.BlockSpec((1, tn), lambda i, j, k: (0, j)),
            ],
            out_specs=pl.BlockSpec((tm, tn), lambda i, j, k: (i, j)),
            scratch_shapes=[pltpu.VMEM((tm, tn), jnp.float32)],
        ),
        compiler_params=pltpu.CompilerParams(
            dimension_semantics=("parallel", "parallel", "arbitrary"),
            vmem_limit_bytes=_VMEM_LIMIT),
    )(x, w, b)


# ---------------------------------------------------------------------------
# Causal flash attention on a triangular (qi, ki) grid (ki <= qi only).
# Shared kernel body; the two wrappers differ only in BlockSpecs / layout.
# ---------------------------------------------------------------------------
def _flash_kernel(qi_ref, ki_ref, q_ref, k_ref, v_ref, o_ref,
                  m_sc, l_sc, acc_sc, *, scale):
    step = pl.program_id(2)
    qi = qi_ref[step]
    ki = ki_ref[step]

    @pl.when(ki == 0)                       # first KV block of this q tile
    def _():
        m_sc[...] = jnp.full_like(m_sc, -jnp.inf)
        l_sc[...] = jnp.zeros_like(l_sc)
        acc_sc[...] = jnp.zeros_like(acc_sc)

    # Pre-scale q once per step: tq*hd multiplies instead of tq*tk.
    q = q_ref[...] * scale                  # (tq, hd), native dtype
    k = k_ref[...]                          # (tk, hd)
    v = v_ref[...]                          # (tk, hd)

    # Contract last axes directly (no k.T / XLU transpose); f32 scores.
    s = lax.dot_general(q, k, (((1,), (1,)), ((), ())),
                        preferred_element_type=jnp.float32)     # (tq, tk)

    def _update(scores):
        m_prev = m_sc[...]
        m_new = jnp.maximum(m_prev, jnp.max(scores, axis=-1, keepdims=True))
        alpha = jnp.exp(m_prev - m_new)
        p = jnp.exp(scores - m_new)
        l_sc[...] = alpha * l_sc[...] + jnp.sum(p, axis=-1, keepdims=True)
        acc_sc[...] = alpha * acc_sc[...] + jnp.dot(
            p.astype(v.dtype), v, preferred_element_type=jnp.float32)
        m_sc[...] = m_new

    @pl.when(ki < qi)                       # below-diagonal block: no mask work
    def _():
        _update(s)

    @pl.when(ki == qi)                      # diagonal block: mask + finalize
    def _():
        row = lax.broadcasted_iota(jnp.int32, s.shape, 0)
        col = lax.broadcasted_iota(jnp.int32, s.shape, 1)
        _update(jnp.where(col <= row, s, jnp.float32(-1e30)))  # safe: scores are f32
        inv_l = pl.reciprocal(l_sc[...], approx=False)          # EUP, ~free
        o_ref[...] = (acc_sc[...] * inv_l).astype(o_ref.dtype)


def _tri_step_tables(nt):
    """Flattened triangular schedule: step -> (qi, ki) with ki <= qi."""
    qi, ki = [], []
    for q in range(nt):
        for k in range(q + 1):
            qi.append(q)
            ki.append(k)
    return jnp.asarray(qi, jnp.int32), jnp.asarray(ki, jnp.int32), len(qi)


def _flash_call(kernel, grid, in_specs, out_specs, out_shape, blk, hd,
                qi_tab, ki_tab, operands):
    return pl.pallas_call(
        kernel,
        out_shape=out_shape,
        grid_spec=pltpu.PrefetchScalarGridSpec(
            num_scalar_prefetch=2,
            grid=grid,
            in_specs=in_specs,
            out_specs=out_specs,
            scratch_shapes=[
                pltpu.VMEM((blk, 1), jnp.float32),    # running max m
                pltpu.VMEM((blk, 1), jnp.float32),    # running sum l
                pltpu.VMEM((blk, hd), jnp.float32),   # f32 output accumulator
            ],
        ),
        compiler_params=pltpu.CompilerParams(
            dimension_semantics=("parallel", "parallel", "arbitrary"),
            vmem_limit_bytes=_VMEM_LIMIT),
    )(qi_tab, ki_tab, *operands)


def _flash_attention_fused(qkv, n_head, *, q_block=512):
    """q/k/v read straight out of the fused (B, T, 3C) qkv buffer and the output
    written directly as (B, T, C) — no transposes.  Requires hd % 128 == 0."""
    B, T, C3 = qkv.shape
    C = C3 // 3
    hd = C // n_head
    blk = _pick_tile(T, q_block, _sublane_align(qkv.dtype))
    nt = T // blk
    qi_tab, ki_tab, n_steps = _tri_step_tables(nt)
    kernel = functools.partial(_flash_kernel, scale=1.0 / math.sqrt(hd))

    H = n_head
    q_spec = pl.BlockSpec((None, blk, hd), lambda b, h, s, qi, ki: (b, qi[s], h))
    k_spec = pl.BlockSpec((None, blk, hd), lambda b, h, s, qi, ki: (b, ki[s], H + h))
    v_spec = pl.BlockSpec((None, blk, hd), lambda b, h, s, qi, ki: (b, ki[s], 2 * H + h))
    o_spec = pl.BlockSpec((None, blk, hd), lambda b, h, s, qi, ki: (b, qi[s], h))

    return _flash_call(kernel, (B, H, n_steps), [q_spec, k_spec, v_spec], o_spec,
                       jax.ShapeDtypeStruct((B, T, C), qkv.dtype),
                       blk, hd, qi_tab, ki_tab, (qkv, qkv, qkv))


def _flash_attention_heads(q, k, v, *, q_block=512):
    """Fallback for hd % 128 != 0: head-separated (B, H, T, hd) layout."""
    B, H, T, hd = q.shape
    blk = _pick_tile(T, q_block, _sublane_align(q.dtype))
    nt = T // blk
    qi_tab, ki_tab, n_steps = _tri_step_tables(nt)
    kernel = functools.partial(_flash_kernel, scale=1.0 / math.sqrt(hd))

    q_spec = pl.BlockSpec((None, None, blk, hd),
                          lambda b, h, s, qi, ki: (b, h, qi[s], 0))
    kv_spec = pl.BlockSpec((None, None, blk, hd),
                           lambda b, h, s, qi, ki: (b, h, ki[s], 0))
    o_spec = pl.BlockSpec((None, None, blk, hd),
                          lambda b, h, s, qi, ki: (b, h, qi[s], 0))

    return _flash_call(kernel, (B, H, n_steps), [q_spec, kv_spec, kv_spec], o_spec,
                       jax.ShapeDtypeStruct((B, H, T, hd), q.dtype),
                       blk, hd, qi_tab, ki_tab, (q, k, v))


# ---------------------------------------------------------------------------
# Full CausalSelfAttention forward
# ---------------------------------------------------------------------------
def causal_self_attention(x, w_attn, b_attn, w_proj, b_proj, n_head,
                          *, q_block=512, compute_dtype=None):
    if compute_dtype is not None:   # e.g. jnp.bfloat16; accumulation stays f32 in-kernel
        x, w_attn, b_attn, w_proj, b_proj = (
            a.astype(compute_dtype) for a in (x, w_attn, b_attn, w_proj, b_proj))
    B, T, C = x.shape
    hd = C // n_head

    qkv = _linear(x.reshape(B * T, C), w_attn, b_attn)          # (B*T, 3C)

    if hd % 128 == 0:
        # Head slicing and output scatter folded into BlockSpecs (no transposes).
        y = _flash_attention_fused(qkv.reshape(B, T, 3 * C), n_head,
                                   q_block=q_block)             # (B, T, C)
        y2d = y.reshape(B * T, C)
    else:
        # TODO(synk): hd % 128 != 0 keeps the transpose-based layout (the fused
        # channel-block path would violate the (8,128) block rule).
        qkv5 = qkv.reshape(B, T, 3, n_head, hd)
        q = jnp.transpose(qkv5[:, :, 0], (0, 2, 1, 3))          # (B, H, T, hd)
        k = jnp.transpose(qkv5[:, :, 1], (0, 2, 1, 3))
        v = jnp.transpose(qkv5[:, :, 2], (0, 2, 1, 3))
        y = _flash_attention_heads(q, k, v, q_block=q_block)    # (B, H, T, hd)
        y2d = jnp.transpose(y, (0, 2, 1, 3)).reshape(B * T, C)

    out = _linear(y2d, w_proj, b_proj)                          # (B*T, C)
    return out.reshape(B, T, C)


# ---------------------------------------------------------------------------
# Pure-JAX reference
# ---------------------------------------------------------------------------
def _reference(x, w_attn, b_attn, w_proj, b_proj, n_head):
    B, T, C = x.shape
    hd = C // n_head
    qkv = jnp.einsum("btc,cd->btd", x, w_attn) + b_attn[0]
    q, k, v = jnp.split(qkv, 3, axis=-1)
    q = q.reshape(B, T, n_head, hd).transpose(0, 2, 1, 3)
    k = k.reshape(B, T, n_head, hd).transpose(0, 2, 1, 3)
    v = v.reshape(B, T, n_head, hd).transpose(0, 2, 1, 3)
    s = jnp.einsum("bhqd,bhkd->bhqk", q, k) / math.sqrt(hd)
    mask = jnp.tril(jnp.ones((T, T), bool))
    s = jnp.where(mask, s, -jnp.inf)
    p = jax.nn.softmax(s, axis=-1)
    y = jnp.einsum("bhqk,bhkd->bhqd", p, v)
    y = y.transpose(0, 2, 1, 3).reshape(B, T, C)
    return jnp.einsum("btc,cd->btd", y, w_proj) + b_proj[0]


if __name__ == "__main__":
    def make(key, B, T, C, n_head):
        ks = jax.random.split(key, 5)
        x = jax.random.normal(ks[0], (B, T, C), jnp.float32)
        w_attn = jax.random.normal(ks[1], (C, 3 * C), jnp.float32) * 0.02
        b_attn = jax.random.normal(ks[2], (1, 3 * C), jnp.float32) * 0.02
        w_proj = jax.random.normal(ks[3], (C, C), jnp.float32) * 0.02
        b_proj = jax.random.normal(ks[4], (1, C), jnp.float32) * 0.02
        return x, w_attn, b_attn, w_proj, b_proj

    # Config 1: hd = 128 -> fused (transpose-free) flash path.  q_block=32 so the
    # triangular grid has 4 q tiles / 10 (qi,ki) steps per (b,h).
    B, T, C, H = 2, 128, 256, 2
    args = make(jax.random.PRNGKey(0), B, T, C, H)
    out = jax.block_until_ready(causal_self_attention(*args, H, q_block=32))
    ref = _reference(*args, H)
    assert out.shape == (B, T, C)
    assert jnp.allclose(out, ref, atol=1e-3, rtol=1e-3), "f32 fused path mismatch"

    # Same config with bf16 operands (f32 accumulation in-kernel).
    out_bf16 = jax.block_until_ready(
        causal_self_attention(*args, H, q_block=32, compute_dtype=jnp.bfloat16))
    assert jnp.allclose(out_bf16.astype(jnp.float32), ref, atol=5e-2, rtol=5e-2), \
        "bf16 path mismatch"

    # Config 2: hd = 8 -> head-separated fallback path.
    B2, T2, C2, H2 = 2, 32, 32, 4
    args2 = make(jax.random.PRNGKey(1), B2, T2, C2, H2)
    out2 = jax.block_until_ready(causal_self_attention(*args2, H2, q_block=8))
    ref2 = _reference(*args2, H2)
    assert out2.shape == (B2, T2, C2)
    assert jnp.allclose(out2, ref2, atol=1e-3, rtol=1e-3), "fallback path mismatch"

    print("KERNEL_OK")
</pallas_src>

<mosaic_0001>
module attributes {stable_mosaic.version = 11 : i64} {
  func.func @_linear_fullk_kernel(%arg0: i32, %arg1: i32, %arg2: memref<256x256xf32, #tpu.memory_space<vmem>>, %arg3: memref<256x768xf32, #tpu.memory_space<vmem>>, %arg4: memref<1x768xf32, #tpu.memory_space<vmem>>, %arg5: memref<256x768xf32, #tpu.memory_space<vmem>>) attributes {dimension_semantics = [#tpu.dimension_semantics<parallel>, #tpu.dimension_semantics<parallel>], iteration_bounds = array<i64: 1, 1>, scalar_prefetch = 0 : i64, scratch_operands = 0 : i64, tpu.core_type = #tpu.core_type<tc>, window_params = [{transform_indices = @transform_0, window_bounds = array<i64: 256, 256>}, {transform_indices = @transform_1, window_bounds = array<i64: 256, 768>}, {transform_indices = @transform_2, window_bounds = array<i64: 1, 768>}, {transform_indices = @transform_3, window_bounds = array<i64: 256, 768>}]} {
    %c0 = arith.constant 0 : index
    %c0_0 = arith.constant 0 : index
    %0 = vector.load %arg2[%c0, %c0_0] : memref<256x256xf32, #tpu.memory_space<vmem>>, vector<256x256xf32>
    %c0_1 = arith.constant 0 : index
    %c0_2 = arith.constant 0 : index
    %1 = vector.load %arg3[%c0_1, %c0_2] : memref<256x768xf32, #tpu.memory_space<vmem>>, vector<256x768xf32>
    %cst = arith.constant dense<0.000000e+00> : vector<256x768xf32>
    %2 = tpu.matmul %0, %1, %cst {dimension_numbers = #tpu.dot_dimension_numbers<[1], [0], [0], [1], [0, 0, 1, 1], [], []>} : vector<256x256xf32>, vector<256x768xf32>, vector<256x768xf32> -> vector<256x768xf32>
    %c0_3 = arith.constant 0 : index
    %c0_4 = arith.constant 0 : index
    %3 = vector.load %arg4[%c0_3, %c0_4] : memref<1x768xf32, #tpu.memory_space<vmem>>, vector<1x768xf32>
    %4 = vector.broadcast %3 : vector<1x768xf32> to vector<256x768xf32>
    %5 = arith.addf %2, %4 : vector<256x768xf32>
    %c0_5 = arith.constant 0 : index
    %c0_6 = arith.constant 0 : index
    %6 = vector.load %arg5[%c0_5, %c0_6] : memref<256x768xf32, #tpu.memory_space<vmem>>, vector<256x768xf32>
    tpu.vector_store %arg5[%c0_5, %c0_6], %5 {strides = array<i32>} : memref<256x768xf32, #tpu.memory_space<vmem>>, vector<256x768xf32>,
    return
  }
  func.func @transform_0(%arg0: i32, %arg1: i32) -> (i32, i32) {
    %c0_i32 = arith.constant 0 : i32
    %c0_i32_0 = arith.constant 0 : i32
    return %arg1, %c0_i32 : i32, i32
  }
  func.func @transform_1(%arg0: i32, %arg1: i32) -> (i32, i32) {
    %c0_i32 = arith.constant 0 : i32
    %c0_i32_0 = arith.constant 0 : i32
    return %c0_i32, %arg0 : i32, i32
  }
  func.func @transform_2(%arg0: i32, %arg1: i32) -> (i32, i32) {
    %c0_i32 = arith.constant 0 : i32
    %c0_i32_0 = arith.constant 0 : i32
    return %c0_i32, %arg0 : i32, i32
  }
  func.func @transform_3(%arg0: i32, %arg1: i32) -> (i32, i32) {
    %c0_i32 = arith.constant 0 : i32
    return %arg1, %arg0 : i32, i32
  }
}

</mosaic_0001>

<llo_original>
// kernel: tpu_custom_call.1
$region0: #{tpu_custom_call.1}
  #allocation0 [shape = 'u32[]', space=smem, size = 0x4, offset = 0x4, fixed_abs, tag = 'smem constant byte address 0x4 - core index']
  #allocation1 [shape = 'u32[72,128]{1,0:T(1,128)}', space=vmem, size = 0x9000, scoped, tag = 'internal scratch']
  %s0 = inlined_call_operand.hbm [shape: f32[256,256], index: 0, kind: input, shape index: {}]
  %s1 = inlined_call_operand.hbm [shape: f32[256,768], index: 1, kind: input, shape index: {}]
  %s2 = inlined_call_operand.hbm [shape: f32[1,768], index: 2, kind: input, shape index: {}]
  %s3 = inlined_call_operand.hbm [shape: f32[256,768], index: 3, kind: output, shape index: {}]
  %s4 = sld [smem:[#allocation0]]
  $region34: #{tpu_custom_call.1} parent=0
    _
  %s6 = ssub.s32 1, %s4
  %s7 = scalar_select 0, %s6, %s4
  $region1: #{tpu_custom_call.1} parent=0
    #allocation2 [shape = 'u8[262144]{0}', space=vmem, size = 0x40000, scoped, tag = 'input window, operand 0, single buffered']
    #allocation3 [shape = 's32[1]{0}', space=sflag, size = 0x4, scoped, tag = 'scoped memory for tpu_custom_call.1']
    #allocation4 [shape = 's32[1]{0}', space=sflag, size = 0x4, scoped, tag = 'scoped memory for tpu_custom_call.1']
    #allocation5 [shape = 'u8[786432]{0}', space=vmem, size = 0xc0000, scoped, tag = 'input window, operand 1, single buffered']
    #allocation6 [shape = 's32[1]{0}', space=sflag, size = 0x4, scoped, tag = 'scoped memory for tpu_custom_call.1']
    #allocation7 [shape = 'u8[3072]{0}', space=vmem, size = 0xc00, scoped, tag = 'input window, operand 2, single buffered']
    #allocation8 [shape = 'u8[786432]{0}', space=vmem, size = 0xc0000, scoped, tag = 'output window, operand 0, single buffered']
    %8 = vsyncpa [#allocation3], 0
    %9 = vsyncpa [#allocation6], 0
    %10 = vsyncpa [#allocation4], 0
    // Predicated region
    $region2: #{tpu_custom_call.1} parent=1 // pred_check
      _
    $region3: #{tpu_custom_call.1} parent=1 // pred_check_branch
      %12 = sbr.rel (0) target = $region5
    $region4: #{tpu_custom_call.1} parent=1 // pred_region
      %14 = vsyncadd [#allocation3], 0
      %s15 = sshll.u32 %s0, 4
      %s16 = int_to_ptr.hbm [resolvable:$true] %s15
      %s17 = sshll.u32 [#allocation2], 4
      %s18 = int_to_ptr.vmem [resolvable:$true] %s17
      %23 = dma.hbm_to_vmem [thread:$0]  %s16, 8192, %s18, [#allocation3], 256, 256, 16
    $region5: #{tpu_custom_call.1} parent=1 // pred_fallthru
      _
    // Predicated region
    $region6: #{tpu_custom_call.1} parent=1 // pred_check
      _
    $region7: #{tpu_custom_call.1} parent=1 // pred_check_branch
      %25 = sbr.rel (0) target = $region9
    $region8: #{tpu_custom_call.1} parent=1 // pred_region
      %27 = vsyncadd [#allocation6], 0
      %s28 = sshll.u32 %s1, 4
      %s29 = int_to_ptr.hbm [resolvable:$true] %s28
      %s30 = sshll.u32 [#allocation5], 4
      %s31 = int_to_ptr.vmem [resolvable:$true] %s30
      %36 = dma.hbm_to_vmem [thread:$0]  %s29, 24576, %s31, [#allocation6], 768, 768, 48
    $region9: #{tpu_custom_call.1} parent=1 // pred_fallthru
      _
    // Predicated region
    $region10: #{tpu_custom_call.1} parent=1 // pred_check
      _
    $region11: #{tpu_custom_call.1} parent=1 // pred_check_branch
      %38 = sbr.rel (0) target = $region13
    $region12: #{tpu_custom_call.1} parent=1 // pred_region
      %40 = vsyncadd [#allocation6], 0
      %s42 = sshll.u32 %s2, 4
      %s43 = int_to_ptr.hbm [resolvable:$true] %s42
      %s44 = sshll.u32 [#allocation7], 4
      %s45 = int_to_ptr.vmem [resolvable:$true] %s44
      %47 = dma.hbm_to_vmem [thread:$0]  %s43, 96, %s45, [#allocation6]
    $region13: #{tpu_custom_call.1} parent=1 // pred_fallthru
      _
    // Predicated region
    $region14: #{tpu_custom_call.1} parent=1 // pred_check
      _
    $region15: #{tpu_custom_call.1} parent=1 // pred_check_branch
      %49 = sbr.rel (0) target = $region17
    $region16: #{tpu_custom_call.1} parent=1 // pred_region
      %51 = dma.done [#allocation3], 8192
    $region17: #{tpu_custom_call.1} parent=1 // pred_fallthru
      _
    // Predicated region
    $region18: #{tpu_custom_call.1} parent=1 // pred_check
      _
    $region19: #{tpu_custom_call.1} parent=1 // pred_check_branch
      %53 = sbr.rel (0) target = $region21
    $region20: #{tpu_custom_call.1} parent=1 // pred_region
      %55 = dma.done [#allocation6], 24576
    $region21: #{tpu_custom_call.1} parent=1 // pred_fallthru
      _
    // Predicated region
    $region22: #{tpu_custom_call.1} parent=1 // pred_check
      _
    $region23: #{tpu_custom_call.1} parent=1 // pred_check_branch
      %57 = sbr.rel (0) target = $region25
    $region24: #{tpu_custom_call.1} parent=1 // pred_region
      %59 = dma.done [#allocation6], 96
    $region25: #{tpu_custom_call.1} parent=1 // pred_fallthru
      _
    %v60 = vld [vmem:[#allocation2] sm:$0xff]
    %v61 = vld [vmem:[#allocation2 + $0x8] sm:$0xff]
    %v62 = vld [vmem:[#allocation2 + $0x10] sm:$0xff]
    %v63 = vld [vmem:[#allocation2 + $0x18] sm:$0xff]
    %v64 = vld [vmem:[#allocation2 + $0x20] sm:$0xff]
    %v65 = vld [vmem:[#allocation2 + $0x28] sm:$0xff]
    %v66 = vld [vmem:[#allocation2 + $0x30] sm:$0xff]
    %v67 = vld [vmem:[#allocation2 + $0x38] sm:$0xff]
    %v68 = vld [vmem:[#allocation2 + $0x40] sm:$0xff]
    %v69 = vld [vmem:[#allocation2 + $0x48] sm:$0xff]
    %v70 = vld [vmem:[#allocation2 + $0x50] sm:$0xff]
    %v71 = vld [vmem:[#allocation2 + $0x58] sm:$0xff]
    %v72 = vld [vmem:[#allocation2 + $0x60] sm:$0xff]
    %v73 = vld [vmem:[#allocation2 + $0x68] sm:$0xff]
    %v74 = vld [vmem:[#allocation2 + $0x70] sm:$0xff]
    %v75 = vld [vmem:[#allocation2 + $0x78] sm:$0xff]
    %v76 = vld [vmem:[#allocation2 + $0x80] sm:$0xff]
    %v77 = vld [vmem:[#allocation2 + $0x88] sm:$0xff]
    %v78 = vld [vmem:[#allocation2 + $0x90] sm:$0xff]
    %v79 = vld [vmem:[#allocation2 + $0x98] sm:$0xff]
    %v80 = vld [vmem:[#allocation2 + $0xa0] sm:$0xff]
    %v81 = vld [vmem:[#allocation2 + $0xa8] sm:$0xff]
    %v82 = vld [vmem:[#allocation2 + $0xb0] sm:$0xff]
    %v83 = vld [vmem:[#allocation2 + $0xb8] sm:$0xff]
    %v84 = vld [vmem:[#allocation2 + $0xc0] sm:$0xff]
    %v85 = vld [vmem:[#allocation2 + $0xc8] sm:$0xff]
    %v86 = vld [vmem:[#allocation2 + $0xd0] sm:$0xff]
    %v87 = vld [vmem:[#allocation2 + $0xd8] sm:$0xff]
    %v88 = vld [vmem:[#allocation2 + $0xe0] sm:$0xff]
    %v89 = vld [vmem:[#allocation2 + $0xe8] sm:$0xff]
    %v90 = vld [vmem:[#allocation2 + $0xf0] sm:$0xff]
    %v91 = vld [vmem:[#allocation2 + $0xf8] sm:$0xff]
    %v92 = vld [vmem:[#allocation2 + $0x100] sm:$0xff]
    %v93 = vld [vmem:[#allocation2 + $0x108] sm:$0xff]
    %v94 = vld [vmem:[#allocation2 + $0x110] sm:$0xff]
    %v95 = vld [vmem:[#allocation2 + $0x118] sm:$0xff]
    %v96 = vld [vmem:[#allocation2 + $0x120] sm:$0xff]
    %v97 = vld [vmem:[#allocation2 + $0x128] sm:$0xff]
    %v98 = vld [vmem:[#allocation2 + $0x130] sm:$0xff]
    %v99 = vld [vmem:[#allocation2 + $0x138] sm:$0xff]
    %v100 = vld [vmem:[#allocation2 + $0x140] sm:$0xff]
    %v101 = vld [vmem:[#allocation2 + $0x148] sm:$0xff]
    %v102 = vld [vmem:[#allocation2 + $0x150] sm:$0xff]
    %v103 = vld [vmem:[#allocation2 + $0x158] sm:$0xff]
    %v104 = vld [vmem:[#allocation2 + $0x160] sm:$0xff]
    %v105 = vld [vmem:[#allocation2 + $0x168] sm:$0xff]
    %v106 = vld [vmem:[#allocation2 + $0x170] sm:$0xff]
    %v107 = vld [vmem:[#allocation2 + $0x178] sm:$0xff]
    %v108 = vld [vmem:[#allocation2 + $0x180] sm:$0xff]
    %v109 = vld [vmem:[#allocation2 + $0x188] sm:$0xff]
    %v110 = vld [vmem:[#allocation2 + $0x190] sm:$0xff]
    %v111 = vld [vmem:[#allocation2 + $0x198] sm:$0xff]
    %v112 = vld [vmem:[#allocation2 + $0x1a0] sm:$0xff]
    %v113 = vld [vmem:[#allocation2 + $0x1a8] sm:$0xff]
    %v114 = vld [vmem:[#allocation2 + $0x1b0] sm:$0xff]
    %v115 = vld [vmem:[#allocation2 + $0x1b8] sm:$0xff]
    %v116 = vld [vmem:[#allocation2 + $0x1c0] sm:$0xff]
    %v117 = vld [vmem:[#allocation2 + $0x1c8] sm:$0xff]
    %v118 = vld [vmem:[#allocation2 + $0x1d0] sm:$0xff]
    %v119 = vld [vmem:[#allocation2 + $0x1d8] sm:$0xff]
    %v120 = vld [vmem:[#allocation2 + $0x1e0] sm:$0xff]
    %v121 = vld [vmem:[#allocation2 + $0x1e8] sm:$0xff]
    %v122 = vld [vmem:[#allocation2 + $0x1f0] sm:$0xff]
    %v123 = vld [vmem:[#allocation2 + $0x1f8] sm:$0xff]
    %v124 = vld [vmem:[#allocation5] sm:$0xff]
    %v125 = vld [vmem:[#allocation5 + $0x8] sm:$0xff]
    %v126 = vld [vmem:[#allocation5 + $0x10] sm:$0xff]
    %v127 = vld [vmem:[#allocation5 + $0x18] sm:$0xff]
    %v128 = vld [vmem:[#allocation5 + $0x20] sm:$0xff]
    %v129 = vld [vmem:[#allocation5 + $0x28] sm:$0xff]
    %v130 = vld [vmem:[#allocation5 + $0x30] sm:$0xff]
    %v131 = vld [vmem:[#allocation5 + $0x38] sm:$0xff]
    %v132 = vld [vmem:[#allocation5 + $0x40] sm:$0xff]
    %v133 = vld [vmem:[#allocation5 + $0x48] sm:$0xff]
    %v134 = vld [vmem:[#allocation5 + $0x50] sm:$0xff]
    %v135 = vld [vmem:[#allocation5 + $0x58] sm:$0xff]
    %v136 = vld [vmem:[#allocation5 + $0x60] sm:$0xff]
    %v137 = vld [vmem:[#allocation5 + $0x68] sm:$0xff]
    %v138 = vld [vmem:[#allocation5 + $0x70] sm:$0xff]
    %v139 = vld [vmem:[#allocation5 + $0x78] sm:$0xff]
    %v140 = vld [vmem:[#allocation5 + $0x80] sm:$0xff]
    %v141 = vld [vmem:[#allocation5 + $0x88] sm:$0xff]
    %v142 = vld [vmem:[#allocation5 + $0x90] sm:$0xff]
    %v143 = vld [vmem:[#allocation5 + $0x98] sm:$0xff]
    %v144 = vld [vmem:[#allocation5 + $0xa0] sm:$0xff]
    %v145 = vld [vmem:[#allocation5 + $0xa8] sm:$0xff]
    %v146 = vld [vmem:[#allocation5 + $0xb0] sm:$0xff]
    %v147 = vld [vmem:[#allocation5 + $0xb8] sm:$0xff]
    %v148 = vld [vmem:[#allocation5 + $0xc0] sm:$0xff]
    %v149 = vld [vmem:[#allocation5 + $0xc8] sm:$0xff]
    %v150 = vld [vmem:[#allocation5 + $0xd0] sm:$0xff]
    %v151 = vld [vmem:[#allocation5 + $0xd8] sm:$0xff]
    %v152 = vld [vmem:[#allocation5 + $0xe0] sm:$0xff]
    %v153 = vld [vmem:[#allocation5 + $0xe8] sm:$0xff]
    %v154 = vld [vmem:[#allocation5 + $0xf0] sm:$0xff]
    %v155 = vld [vmem:[#allocation5 + $0xf8] sm:$0xff]
    %v156 = vld [vmem:[#allocation5 + $0x100] sm:$0xff]
    %v157 = vld [vmem:[#allocation5 + $0x108] sm:$0xff]
    %v158 = vld [vmem:[#allocation5 + $0x110] sm:$0xff]
    %v159 = vld [vmem:[#allocation5 + $0x118] sm:$0xff]
    %v160 = vld [vmem:[#allocation5 + $0x120] sm:$0xff]
    %v161 = vld [vmem:[#allocation5 + $0x128] sm:$0xff]
    %v162 = vld [vmem:[#allocation5 + $0x130] sm:$0xff]
    %v163 = vld [vmem:[#allocation5 + $0x138] sm:$0xff]
    %v164 = vld [vmem:[#allocation5 + $0x140] sm:$0xff]
    %v165 = vld [vmem:[#allocation5 + $0x148] sm:$0xff]
    %v166 = vld [vmem:[#allocation5 + $0x150] sm:$0xff]
    %v167 = vld [vmem:[#allocation5 + $0x158] sm:$0xff]
    %v168 = vld [vmem:[#allocation5 + $0x160] sm:$0xff]
    %v169 = vld [vmem:[#allocation5 + $0x168] sm:$0xff]
    %v170 = vld [vmem:[#allocation5 + $0x170] sm:$0xff]
    %v171 = vld [vmem:[#allocation5 + $0x178] sm:$0xff]
    %v172 = vld [vmem:[#allocation5 + $0x180] sm:$0xff]
    %v173 = vld [vmem:[#allocation5 + $0x188] sm:$0xff]
    %v174 = vld [vmem:[#allocation5 + $0x190] sm:$0xff]
    %v175 = vld [vmem:[#allocation5 + $0x198] sm:$0xff]
    %v176 = vld [vmem:[#allocation5 + $0x1a0] sm:$0xff]
    %v177 = vld [vmem:[#allocation5 + $0x1a8] sm:$0xff]
    %v178 = vld [vmem:[#allocation5 + $0x1b0] sm:$0xff]
    %v179 = vld [vmem:[#allocation5 + $0x1b8] sm:$0xff]
    %v180 = vld [vmem:[#allocation5 + $0x1c0] sm:$0xff]
    %v181 = vld [vmem:[#allocation5 + $0x1c8] sm:$0xff]
    %v182 = vld [vmem:[#allocation5 + $0x1d0] sm:$0xff]
    %v183 = vld [vmem:[#allocation5 + $0x1d8] sm:$0xff]
    %v184 = vld [vmem:[#allocation5 + $0x1e0] sm:$0xff]
    %v185 = vld [vmem:[#allocation5 + $0x1e8] sm:$0xff]
    %v186 = vld [vmem:[#allocation5 + $0x1f0] sm:$0xff]
    %v187 = vld [vmem:[#allocation5 + $0x1f8] sm:$0xff]
    %v188 = vld [vmem:[#allocation5 + $0x200] sm:$0xff]
    %v189 = vld [vmem:[#allocation5 + $0x208] sm:$0xff]
    %v190 = vld [vmem:[#allocation5 + $0x210] sm:$0xff]
    %v191 = vld [vmem:[#allocation5 + $0x218] sm:$0xff]
    %v192 = vld [vmem:[#allocation5 + $0x220] sm:$0xff]
    %v193 = vld [vmem:[#allocation5 + $0x228] sm:$0xff]
    %v194 = vld [vmem:[#allocation5 + $0x230] sm:$0xff]
    %v195 = vld [vmem:[#allocation5 + $0x238] sm:$0xff]
    %v196 = vld [vmem:[#allocation5 + $0x240] sm:$0xff]
    %v197 = vld [vmem:[#allocation5 + $0x248] sm:$0xff]
    %v198 = vld [vmem:[#allocation5 + $0x250] sm:$0xff]
    %v199 = vld [vmem:[#allocation5 + $0x258] sm:$0xff]
    %v200 = vld [vmem:[#allocation5 + $0x260] sm:$0xff]
    %v201 = vld [vmem:[#allocation5 + $0x268] sm:$0xff]
    %v202 = vld [vmem:[#allocation5 + $0x270] sm:$0xff]
    %v203 = vld [vmem:[#allocation5 + $0x278] sm:$0xff]
    %v204 = vld [vmem:[#allocation5 + $0x280] sm:$0xff]
    %v205 = vld [vmem:[#allocation5 + $0x288] sm:$0xff]
    %v206 = vld [vmem:[#allocation5 + $0x290] sm:$0xff]
    %v207 = vld [vmem:[#allocation5 + $0x298] sm:$0xff]
    %v208 = vld [vmem:[#allocation5 + $0x2a0] sm:$0xff]
    %v209 = vld [vmem:[#allocation5 + $0x2a8] sm:$0xff]
    %v210 = vld [vmem:[#allocation5 + $0x2b0] sm:$0xff]
    %v211 = vld [vmem:[#allocation5 + $0x2b8] sm:$0xff]
    %v212 = vld [vmem:[#allocation5 + $0x2c0] sm:$0xff]
    %v213 = vld [vmem:[#allocation5 + $0x2c8] sm:$0xff]
    %v214 = vld [vmem:[#allocation5 + $0x2d0] sm:$0xff]
    %v215 = vld [vmem:[#allocation5 + $0x2d8] sm:$0xff]
    %v216 = vld [vmem:[#allocation5 + $0x2e0] sm:$0xff]
    %v217 = vld [vmem:[#allocation5 + $0x2e8] sm:$0xff]
    %v218 = vld [vmem:[#allocation5 + $0x2f0] sm:$0xff]
    %v219 = vld [vmem:[#allocation5 + $0x2f8] sm:$0xff]
    %v220 = vld [vmem:[#allocation5 + $0x300] sm:$0xff]
    %v221 = vld [vmem:[#allocation5 + $0x308] sm:$0xff]
    %v222 = vld [vmem:[#allocation5 + $0x310] sm:$0xff]
    %v223 = vld [vmem:[#allocation5 + $0x318] sm:$0xff]
    %v224 = vld [vmem:[#allocation5 + $0x320] sm:$0xff]
    %v225 = vld [vmem:[#allocation5 + $0x328] sm:$0xff]
    %v226 = vld [vmem:[#allocation5 + $0x330] sm:$0xff]
    %v227 = vld [vmem:[#allocation5 + $0x338] sm:$0xff]
    %v228 = vld [vmem:[#allocation5 + $0x340] sm:$0xff]
    %v229 = vld [vmem:[#allocation5 + $0x348] sm:$0xff]
    %v230 = vld [vmem:[#allocation5 + $0x350] sm:$0xff]
    %v231 = vld [vmem:[#allocation5 + $0x358] sm:$0xff]
    %v232 = vld [vmem:[#allocation5 + $0x360] sm:$0xff]
    %v233 = vld [vmem:[#allocation5 + $0x368] sm:$0xff]
    %v234 = vld [vmem:[#allocation5 + $0x370] sm:$0xff]
    %v235 = vld [vmem:[#allocation5 + $0x378] sm:$0xff]
    %v236 = vld [vmem:[#allocation5 + $0x380] sm:$0xff]
    %v237 = vld [vmem:[#allocation5 + $0x388] sm:$0xff]
    %v238 = vld [vmem:[#allocation5 + $0x390] sm:$0xff]
    %v239 = vld [vmem:[#allocation5 + $0x398] sm:$0xff]
    %v240 = vld [vmem:[#allocation5 + $0x3a0] sm:$0xff]
    %v241 = vld [vmem:[#allocation5 + $0x3a8] sm:$0xff]
    %v242 = vld [vmem:[#allocation5 + $0x3b0] sm:$0xff]
    %v243 = vld [vmem:[#allocation5 + $0x3b8] sm:$0xff]
    %v244 = vld [vmem:[#allocation5 + $0x3c0] sm:$0xff]
    %v245 = vld [vmem:[#allocation5 + $0x3c8] sm:$0xff]
    %v246 = vld [vmem:[#allocation5 + $0x3d0] sm:$0xff]
    %v247 = vld [vmem:[#allocation5 + $0x3d8] sm:$0xff]
    %v248 = vld [vmem:[#allocation5 + $0x3e0] sm:$0xff]
    %v249 = vld [vmem:[#allocation5 + $0x3e8] sm:$0xff]
    %v250 = vld [vmem:[#allocation5 + $0x3f0] sm:$0xff]
    %v251 = vld [vmem:[#allocation5 + $0x3f8] sm:$0xff]
    %v252 = vld [vmem:[#allocation5 + $0x400] sm:$0xff]
    %v253 = vld [vmem:[#allocation5 + $0x408] sm:$0xff]
    %v254 = vld [vmem:[#allocation5 + $0x410] sm:$0xff]
    %v255 = vld [vmem:[#allocation5 + $0x418] sm:$0xff]
    %v256 = vld [vmem:[#allocation5 + $0x420] sm:$0xff]
    %v257 = vld [vmem:[#allocation5 + $0x428] sm:$0xff]
    %v258 = vld [vmem:[#allocation5 + $0x430] sm:$0xff]
    %v259 = vld [vmem:[#allocation5 + $0x438] sm:$0xff]
    %v260 = vld [vmem:[#allocation5 + $0x440] sm:$0xff]
    %v261 = vld [vmem:[#allocation5 + $0x448] sm:$0xff]
    %v262 = vld [vmem:[#allocation5 + $0x450] sm:$0xff]
    %v263 = vld [vmem:[#allocation5 + $0x458] sm:$0xff]
    %v264 = vld [vmem:[#allocation5 + $0x460] sm:$0xff]
    %v265 = vld [vmem:[#allocation5 + $0x468] sm:$0xff]
    %v266 = vld [vmem:[#allocation5 + $0x470] sm:$0xff]
    %v267 = vld [vmem:[#allocation5 + $0x478] sm:$0xff]
    %v268 = vld [vmem:[#allocation5 + $0x480] sm:$0xff]
    %v269 = vld [vmem:[#allocation5 + $0x488] sm:$0xff]
    %v270 = vld [vmem:[#allocation5 + $0x490] sm:$0xff]
    %v271 = vld [vmem:[#allocation5 + $0x498] sm:$0xff]
    %v272 = vld [vmem:[#allocation5 + $0x4a0] sm:$0xff]
    %v273 = vld [vmem:[#allocation5 + $0x4a8] sm:$0xff]
    %v274 = vld [vmem:[#allocation5 + $0x4b0] sm:$0xff]
    %v275 = vld [vmem:[#allocation5 + $0x4b8] sm:$0xff]
    %v276 = vld [vmem:[#allocation5 + $0x4c0] sm:$0xff]
    %v277 = vld [vmem:[#allocation5 + $0x4c8] sm:$0xff]
    %v278 = vld [vmem:[#allocation5 + $0x4d0] sm:$0xff]
    %v279 = vld [vmem:[#allocation5 + $0x4d8] sm:$0xff]
    %v280 = vld [vmem:[#allocation5 + $0x4e0] sm:$0xff]
    %v281 = vld [vmem:[#allocation5 + $0x4e8] sm:$0xff]
    %v282 = vld [vmem:[#allocation5 + $0x4f0] sm:$0xff]
    %v283 = vld [vmem:[#allocation5 + $0x4f8] sm:$0xff]
    %v284 = vld [vmem:[#allocation5 + $0x500] sm:$0xff]
    %v285 = vld [vmem:[#allocation5 + $0x508] sm:$0xff]
    %v286 = vld [vmem:[#allocation5 + $0x510] sm:$0xff]
    %v287 = vld [vmem:[#allocation5 + $0x518] sm:$0xff]
    %v288 = vld [vmem:[#allocation5 + $0x520] sm:$0xff]
    %v289 = vld [vmem:[#allocation5 + $0x528] sm:$0xff]
    %v290 = vld [vmem:[#allocation5 + $0x530] sm:$0xff]
    %v291 = vld [vmem:[#allocation5 + $0x538] sm:$0xff]
    %v292 = vld [vmem:[#allocation5 + $0x540] sm:$0xff]
    %v293 = vld [vmem:[#allocation5 + $0x548] sm:$0xff]
    %v294 = vld [vmem:[#allocation5 + $0x550] sm:$0xff]
    %v295 = vld [vmem:[#allocation5 + $0x558] sm:$0xff]
    %v296 = vld [vmem:[#allocation5 + $0x560] sm:$0xff]
    %v297 = vld [vmem:[#allocation5 + $0x568] sm:$0xff]
    %v298 = vld [vmem:[#allocation5 + $0x570] sm:$0xff]
    %v299 = vld [vmem:[#allocation5 + $0x578] sm:$0xff]
    %v300 = vld [vmem:[#allocation5 + $0x580] sm:$0xff]
    %v301 = vld [vmem:[#allocation5 + $0x588] sm:$0xff]
    %v302 = vld [vmem:[#allocation5 + $0x590] sm:$0xff]
    %v303 = vld [vmem:[#allocation5 + $0x598] sm:$0xff]
    %v304 = vld [vmem:[#allocation5 + $0x5a0] sm:$0xff]
    %v305 = vld [vmem:[#allocation5 + $0x5a8] sm:$0xff]
    %v306 = vld [vmem:[#allocation5 + $0x5b0] sm:$0xff]
    %v307 = vld [vmem:[#allocation5 + $0x5b8] sm:$0xff]
    %v308 = vld [vmem:[#allocation5 + $0x5c0] sm:$0xff]
    %v309 = vld [vmem:[#allocation5 + $0x5c8] sm:$0xff]
    %v310 = vld [vmem:[#allocation5 + $0x5d0] sm:$0xff]
    %v311 = vld [vmem:[#allocation5 + $0x5d8] sm:$0xff]
    %v312 = vld [vmem:[#allocation5 + $0x5e0] sm:$0xff]
    %v313 = vld [vmem:[#allocation5 + $0x5e8] sm:$0xff]
    %v314 = vld [vmem:[#allocation5 + $0x5f0] sm:$0xff]
    %v315 = vld [vmem:[#allocation5 + $0x5f8] sm:$0xff]
    %v316 = vld [vmem:[#allocation7] sm:$0x3f]
    %v318 = vperm.slane %v316, 0
    %v319 = vperm.slane %v316, 1
    %v320 = vperm.slane %v316, 2
    %v321 = vperm.slane %v316, 3
    %v322 = vperm.slane %v316, 4
    %v323 = vperm.slane %v316, 5
    %330 = vmatpush.msra.mxu0 %v214
    %331 = vmatpush.msra.mxu0 %v208
    %332 = vmatpush.msra.mxu0 %v202
    %333 = vmatpush.msra.mxu0 %v196
    %334 = vmatpush.msra.mxu0 %v190
    %335 = vmatpush.msra.mxu0 %v184
    %336 = vmatpush.msra.mxu0 %v178
    %337 = vmatpush.msra.mxu0 %v172
    %338 = vmatpush.msra.mxu0 %v166
    %339 = vmatpush.msra.mxu0 %v160
    %340 = vmatpush.msra.mxu0 %v154
    %341 = vmatpush.msra.mxu0 %v148
    %342 = vmatpush.msra.mxu0 %v142
    %343 = vmatpush.msra.mxu0 %v136
    %344 = vmatpush.msra.mxu0 %v130
    %345 = vmatpush.msra.mxu0 %v124
    %346 = vmatmul.f32.gmra.mxu0 %v60
    %v347 = vpop.f32.mrf.mxu0
    %v348 = vadd.f32 %v318, %v347
    %349 = vmatmul.f32.gmra.mxu0 %v62
    %v350 = vpop.f32.mrf.mxu0
    %v351 = vadd.f32 %v318, %v350
    %352 = vmatmul.f32.gmra.mxu0 %v64
    %v353 = vpop.f32.mrf.mxu0
    %v354 = vadd.f32 %v318, %v353
    %355 = vmatmul.f32.gmra.mxu0 %v66
    %v356 = vpop.f32.mrf.mxu0
    %v357 = vadd.f32 %v318, %v356
    %358 = vmatmul.f32.gmra.mxu0 %v68
    %v359 = vpop.f32.mrf.mxu0
    %v360 = vadd.f32 %v318, %v359
    %361 = vmatmul.f32.gmra.mxu0 %v70
    %v362 = vpop.f32.mrf.mxu0
    %v363 = vadd.f32 %v318, %v362
    %364 = vmatmul.f32.gmra.mxu0 %v72
    %v365 = vpop.f32.mrf.mxu0
    %v366 = vadd.f32 %v318, %v365
    %367 = vmatmul.f32.gmra.mxu0 %v74
    %v368 = vpop.f32.mrf.mxu0
    %v369 = vadd.f32 %v318, %v368
    %370 = vmatmul.f32.gmra.mxu0 %v76
    %v371 = vpop.f32.mrf.mxu0
    %v372 = vadd.f32 %v318, %v371
    %373 = vmatmul.f32.gmra.mxu0 %v78
    %v374 = vpop.f32.mrf.mxu0
    %v375 = vadd.f32 %v318, %v374
    %376 = vmatmul.f32.gmra.mxu0 %v80
    %v377 = vpop.f32.mrf.mxu0
    %v378 = vadd.f32 %v318, %v377
    %379 = vmatmul.f32.gmra.mxu0 %v82
    %v380 = vpop.f32.mrf.mxu0
    %v381 = vadd.f32 %v318, %v380
    %382 = vmatmul.f32.gmra.mxu0 %v84
    %v383 = vpop.f32.mrf.mxu0
    %v384 = vadd.f32 %v318, %v383
    %385 = vmatmul.f32.gmra.mxu0 %v86
    %v386 = vpop.f32.mrf.mxu0
    %v387 = vadd.f32 %v318, %v386
    %388 = vmatmul.f32.gmra.mxu0 %v88
    %v389 = vpop.f32.mrf.mxu0
    %v390 = vadd.f32 %v318, %v389
    %391 = vmatmul.f32.gmra.mxu0 %v90
    %v392 = vpop.f32.mrf.mxu0
    %v393 = vadd.f32 %v318, %v392
    %394 = vmatmul.f32.gmra.mxu0 %v92
    %v395 = vpop.f32.mrf.mxu0
    %v396 = vadd.f32 %v318, %v395
    %397 = vmatmul.f32.gmra.mxu0 %v94
    %v398 = vpop.f32.mrf.mxu0
    %v399 = vadd.f32 %v318, %v398
    %400 = vmatmul.f32.gmra.mxu0 %v96
    %v401 = vpop.f32.mrf.mxu0
    %v402 = vadd.f32 %v318, %v401
    %403 = vmatmul.f32.gmra.mxu0 %v98
    %v404 = vpop.f32.mrf.mxu0
    %v405 = vadd.f32 %v318, %v404
    %406 = vmatmul.f32.gmra.mxu0 %v100
    %v407 = vpop.f32.mrf.mxu0
    %v408 = vadd.f32 %v318, %v407
    %409 = vmatmul.f32.gmra.mxu0 %v102
    %v410 = vpop.f32.mrf.mxu0
    %v411 = vadd.f32 %v318, %v410
    %412 = vmatmul.f32.gmra.mxu0 %v104
    %v413 = vpop.f32.mrf.mxu0
    %v414 = vadd.f32 %v318, %v413
    %415 = vmatmul.f32.gmra.mxu0 %v106
    %v416 = vpop.f32.mrf.mxu0
    %v417 = vadd.f32 %v318, %v416
    %418 = vmatmul.f32.gmra.mxu0 %v108
    %v419 = vpop.f32.mrf.mxu0
    %v420 = vadd.f32 %v318, %v419
    %421 = vmatmul.f32.gmra.mxu0 %v110
    %v422 = vpop.f32.mrf.mxu0
    %v423 = vadd.f32 %v318, %v422
    %424 = vmatmul.f32.gmra.mxu0 %v112
    %v425 = vpop.f32.mrf.mxu0
    %v426 = vadd.f32 %v318, %v425
    %427 = vmatmul.f32.gmra.mxu0 %v114
    %v428 = vpop.f32.mrf.mxu0
    %v429 = vadd.f32 %v318, %v428
    %430 = vmatmul.f32.gmra.mxu0 %v116
    %v431 = vpop.f32.mrf.mxu0
    %v432 = vadd.f32 %v318, %v431
    %433 = vmatmul.f32.gmra.mxu0 %v118
    %v434 = vpop.f32.mrf.mxu0
    %v435 = vadd.f32 %v318, %v434
    %436 = vmatmul.f32.gmra.mxu0 %v120
    %v437 = vpop.f32.mrf.mxu0
    %v438 = vadd.f32 %v318, %v437
    %439 = vmatmul.f32.gmra.mxu0 %v122
    %v440 = vpop.f32.mrf.mxu0
    %v441 = vadd.f32 %v318, %v440
    %442 = vdwg.mxu0
    %443 = vmatpush.msra.mxu0 %v310
    %444 = vmatpush.msra.mxu0 %v304
    %445 = vmatpush.msra.mxu0 %v298
    %446 = vmatpush.msra.mxu0 %v292
    %447 = vmatpush.msra.mxu0 %v286
    %448 = vmatpush.msra.mxu0 %v280
    %449 = vmatpush.msra.mxu0 %v274
    %450 = vmatpush.msra.mxu0 %v268
    %451 = vmatpush.msra.mxu0 %v262
    %452 = vmatpush.msra.mxu0 %v256
    %453 = vmatpush.msra.mxu0 %v250
    %454 = vmatpush.msra.mxu0 %v244
    %455 = vmatpush.msra.mxu0 %v238
    %456 = vmatpush.msra.mxu0 %v232
    %457 = vmatpush.msra.mxu0 %v226
    %458 = vmatpush.msra.mxu0 %v220
    %459 = vmatmul.f32.gmra.mxu0 %v61
    %v460 = vpop.f32.mrf.mxu0
    %v461 = vadd.f32 %v348, %v460
    %462 = vmatmul.f32.gmra.mxu0 %v63
    %v463 = vpop.f32.mrf.mxu0
    %v464 = vadd.f32 %v351, %v463
    %465 = vmatmul.f32.gmra.mxu0 %v65
    %v466 = vpop.f32.mrf.mxu0
    %v467 = vadd.f32 %v354, %v466
    %468 = vmatmul.f32.gmra.mxu0 %v67
    %v469 = vpop.f32.mrf.mxu0
    %v470 = vadd.f32 %v357, %v469
    %471 = vmatmul.f32.gmra.mxu0 %v69
    %v472 = vpop.f32.mrf.mxu0
    %v473 = vadd.f32 %v360, %v472
    %474 = vmatmul.f32.gmra.mxu0 %v71
    %v475 = vpop.f32.mrf.mxu0
    %v476 = vadd.f32 %v363, %v475
    %477 = vmatmul.f32.gmra.mxu0 %v73
    %v478 = vpop.f32.mrf.mxu0
    %v479 = vadd.f32 %v366, %v478
    %480 = vmatmul.f32.gmra.mxu0 %v75
    %v481 = vpop.f32.mrf.mxu0
    %v482 = vadd.f32 %v369, %v481
    %483 = vmatmul.f32.gmra.mxu0 %v77
    %v484 = vpop.f32.mrf.mxu0
    %v485 = vadd.f32 %v372, %v484
    %486 = vmatmul.f32.gmra.mxu0 %v79
    %v487 = vpop.f32.mrf.mxu0
    %v488 = vadd.f32 %v375, %v487
    %489 = vmatmul.f32.gmra.mxu0 %v81
    %v490 = vpop.f32.mrf.mxu0
    %v491 = vadd.f32 %v378, %v490
    %492 = vmatmul.f32.gmra.mxu0 %v83
    %v493 = vpop.f32.mrf.mxu0
    %v494 = vadd.f32 %v381, %v493
    %495 = vmatmul.f32.gmra.mxu0 %v85
    %v496 = vpop.f32.mrf.mxu0
    %v497 = vadd.f32 %v384, %v496
    %498 = vmatmul.f32.gmra.mxu0 %v87
    %v499 = vpop.f32.mrf.mxu0
    %v500 = vadd.f32 %v387, %v499
    %501 = vmatmul.f32.gmra.mxu0 %v89
    %v502 = vpop.f32.mrf.mxu0
    %v503 = vadd.f32 %v390, %v502
    %504 = vmatmul.f32.gmra.mxu0 %v91
    %v505 = vpop.f32.mrf.mxu0
    %v506 = vadd.f32 %v393, %v505
    %507 = vmatmul.f32.gmra.mxu0 %v93
    %v508 = vpop.f32.mrf.mxu0
    %v509 = vadd.f32 %v396, %v508
    %510 = vmatmul.f32.gmra.mxu0 %v95
    %v511 = vpop.f32.mrf.mxu0
    %v512 = vadd.f32 %v399, %v511
    %513 = vmatmul.f32.gmra.mxu0 %v97
    %v514 = vpop.f32.mrf.mxu0
    %v515 = vadd.f32 %v402, %v514
    %516 = vmatmul.f32.gmra.mxu0 %v99
    %v517 = vpop.f32.mrf.mxu0
    %v518 = vadd.f32 %v405, %v517
    %519 = vmatmul.f32.gmra.mxu0 %v101
    %v520 = vpop.f32.mrf.mxu0
    %v521 = vadd.f32 %v408, %v520
    %522 = vmatmul.f32.gmra.mxu0 %v103
    %v523 = vpop.f32.mrf.mxu0
    %v524 = vadd.f32 %v411, %v523
    %525 = vmatmul.f32.gmra.mxu0 %v105
    %v526 = vpop.f32.mrf.mxu0
    %v527 = vadd.f32 %v414, %v526
    %528 = vmatmul.f32.gmra.mxu0 %v107
    %v529 = vpop.f32.mrf.mxu0
    %v530 = vadd.f32 %v417, %v529
    %531 = vmatmul.f32.gmra.mxu0 %v109
    %v532 = vpop.f32.mrf.mxu0
    %v533 = vadd.f32 %v420, %v532
    %534 = vmatmul.f32.gmra.mxu0 %v111
    %v535 = vpop.f32.mrf.mxu0
    %v536 = vadd.f32 %v423, %v535
    %537 = vmatmul.f32.gmra.mxu0 %v113
    %v538 = vpop.f32.mrf.mxu0
    %v539 = vadd.f32 %v426, %v538
    %540 = vmatmul.f32.gmra.mxu0 %v115
    %v541 = vpop.f32.mrf.mxu0
    %v542 = vadd.f32 %v429, %v541
    %543 = vmatmul.f32.gmra.mxu0 %v117
    %v544 = vpop.f32.mrf.mxu0
    %v545 = vadd.f32 %v432, %v544
    %546 = vmatmul.f32.gmra.mxu0 %v119
    %v547 = vpop.f32.mrf.mxu0
    %v548 = vadd.f32 %v435, %v547
    %549 = vmatmul.f32.gmra.mxu0 %v121
    %v550 = vpop.f32.mrf.mxu0
    %v551 = vadd.f32 %v438, %v550
    %552 = vmatmul.f32.gmra.mxu0 %v123
    %v553 = vpop.f32.mrf.mxu0
    %v554 = vadd.f32 %v441, %v553
    %555 = vdwg.mxu0
    %556 = vmatpush.msra.mxu0 %v215
    %557 = vmatpush.msra.mxu0 %v209
    %558 = vmatpush.msra.mxu0 %v203
    %559 = vmatpush.msra.mxu0 %v197
    %560 = vmatpush.msra.mxu0 %v191
    %561 = vmatpush.msra.mxu0 %v185
    %562 = vmatpush.msra.mxu0 %v179
    %563 = vmatpush.msra.mxu0 %v173
    %564 = vmatpush.msra.mxu0 %v167
    %565 = vmatpush.msra.mxu0 %v161
    %566 = vmatpush.msra.mxu0 %v155
    %567 = vmatpush.msra.mxu0 %v149
    %568 = vmatpush.msra.mxu0 %v143
    %569 = vmatpush.msra.mxu0 %v137
    %570 = vmatpush.msra.mxu0 %v131
    %571 = vmatpush.msra.mxu0 %v125
    %572 = vmatmul.f32.gmra.mxu0 %v60
    %v573 = vpop.f32.mrf.mxu0
    %v574 = vadd.f32 %v319, %v573
    %575 = vmatmul.f32.gmra.mxu0 %v62
    %v576 = vpop.f32.mrf.mxu0
    %v577 = vadd.f32 %v319, %v576
    %578 = vmatmul.f32.gmra.mxu0 %v64
    %v579 = vpop.f32.mrf.mxu0
    %v580 = vadd.f32 %v319, %v579
    %581 = vmatmul.f32.gmra.mxu0 %v66
    %v582 = vpop.f32.mrf.mxu0
    %v583 = vadd.f32 %v319, %v582
    %584 = vmatmul.f32.gmra.mxu0 %v68
    %v585 = vpop.f32.mrf.mxu0
    %v586 = vadd.f32 %v319, %v585
    %587 = vmatmul.f32.gmra.mxu0 %v70
    %v588 = vpop.f32.mrf.mxu0
    %v589 = vadd.f32 %v319, %v588
    %590 = vmatmul.f32.gmra.mxu0 %v72
    %v591 = vpop.f32.mrf.mxu0
    %v592 = vadd.f32 %v319, %v591
    %593 = vmatmul.f32.gmra.mxu0 %v74
    %v594 = vpop.f32.mrf.mxu0
    %v595 = vadd.f32 %v319, %v594
    %596 = vmatmul.f32.gmra.mxu0 %v76
    %v597 = vpop.f32.mrf.mxu0
    %v598 = vadd.f32 %v319, %v597
    %599 = vmatmul.f32.gmra.mxu0 %v78
    %v600 = vpop.f32.mrf.mxu0
    %v601 = vadd.f32 %v319, %v600
    %602 = vmatmul.f32.gmra.mxu0 %v80
    %v603 = vpop.f32.mrf.mxu0
    %v604 = vadd.f32 %v319, %v603
    %605 = vmatmul.f32.gmra.mxu0 %v82
    %v606 = vpop.f32.mrf.mxu0
    %v607 = vadd.f32 %v319, %v606
    %608 = vmatmul.f32.gmra.mxu0 %v84
    %v609 = vpop.f32.mrf.mxu0
    %v610 = vadd.f32 %v319, %v609
    %611 = vmatmul.f32.gmra.mxu0 %v86
    %v612 = vpop.f32.mrf.mxu0
    %v613 = vadd.f32 %v319, %v612
    %614 = vmatmul.f32.gmra.mxu0 %v88
    %v615 = vpop.f32.mrf.mxu0
    %v616 = vadd.f32 %v319, %v615
    %617 = vmatmul.f32.gmra.mxu0 %v90
    %v618 = vpop.f32.mrf.mxu0
    %v619 = vadd.f32 %v319, %v618
    %620 = vmatmul.f32.gmra.mxu0 %v92
    %v621 = vpop.f32.mrf.mxu0
    %v622 = vadd.f32 %v319, %v621
    %623 = vmatmul.f32.gmra.mxu0 %v94
    %v624 = vpop.f32.mrf.mxu0
    %v625 = vadd.f32 %v319, %v624
    %626 = vmatmul.f32.gmra.mxu0 %v96
    %v627 = vpop.f32.mrf.mxu0
    %v628 = vadd.f32 %v319, %v627
    %629 = vmatmul.f32.gmra.mxu0 %v98
    %v630 = vpop.f32.mrf.mxu0
    %v631 = vadd.f32 %v319, %v630
    %632 = vmatmul.f32.gmra.mxu0 %v100
    %v633 = vpop.f32.mrf.mxu0
    %v634 = vadd.f32 %v319, %v633
    %635 = vmatmul.f32.gmra.mxu0 %v102
    %v636 = vpop.f32.mrf.mxu0
    %v637 = vadd.f32 %v319, %v636
    %638 = vmatmul.f32.gmra.mxu0 %v104
    %v639 = vpop.f32.mrf.mxu0
    %v640 = vadd.f32 %v319, %v639
    %641 = vmatmul.f32.gmra.mxu0 %v106
    %v642 = vpop.f32.mrf.mxu0
    %v643 = vadd.f32 %v319, %v642
    %644 = vmatmul.f32.gmra.mxu0 %v108
    %v645 = vpop.f32.mrf.mxu0
    %v646 = vadd.f32 %v319, %v645
    %647 = vmatmul.f32.gmra.mxu0 %v110
    %v648 = vpop.f32.mrf.mxu0
    %v649 = vadd.f32 %v319, %v648
    %650 = vmatmul.f32.gmra.mxu0 %v112
    %v651 = vpop.f32.mrf.mxu0
    %v652 = vadd.f32 %v319, %v651
    %653 = vmatmul.f32.gmra.mxu0 %v114
    %v654 = vpop.f32.mrf.mxu0
    %v655 = vadd.f32 %v319, %v654
    %656 = vmatmul.f32.gmra.mxu0 %v116
    %v657 = vpop.f32.mrf.mxu0
    %v658 = vadd.f32 %v319, %v657
    %659 = vmatmul.f32.gmra.mxu0 %v118
    %v660 = vpop.f32.mrf.mxu0
    %v661 = vadd.f32 %v319, %v660
    %662 = vmatmul.f32.gmra.mxu0 %v120
    %v663 = vpop.f32.mrf.mxu0
    %v664 = vadd.f32 %v319, %v663
    %665 = vmatmul.f32.gmra.mxu0 %v122
    %v666 = vpop.f32.mrf.mxu0
    %v667 = vadd.f32 %v319, %v666
    %668 = vdwg.mxu0
    %669 = vmatpush.msra.mxu0 %v311
    %670 = vmatpush.msra.mxu0 %v305
    %671 = vmatpush.msra.mxu0 %v299
    %672 = vmatpush.msra.mxu0 %v293
    %673 = vmatpush.msra.mxu0 %v287
    %674 = vmatpush.msra.mxu0 %v281
    %675 = vmatpush.msra.mxu0 %v275
    %676 = vmatpush.msra.mxu0 %v269
    %677 = vmatpush.msra.mxu0 %v263
    %678 = vmatpush.msra.mxu0 %v257
    %679 = vmatpush.msra.mxu0 %v251
    %680 = vmatpush.msra.mxu0 %v245
    %681 = vmatpush.msra.mxu0 %v239
    %682 = vmatpush.msra.mxu0 %v233
    %683 = vmatpush.msra.mxu0 %v227
    %684 = vmatpush.msra.mxu0 %v221
    %685 = vmatmul.f32.gmra.mxu0 %v61
    %v686 = vpop.f32.mrf.mxu0
    %v687 = vadd.f32 %v574, %v686
    %688 = vmatmul.f32.gmra.mxu0 %v63
    %v689 = vpop.f32.mrf.mxu0
    %v690 = vadd.f32 %v577, %v689
    %691 = vmatmul.f32.gmra.mxu0 %v65
    %v692 = vpop.f32.mrf.mxu0
    %v693 = vadd.f32 %v580, %v692
    %694 = vmatmul.f32.gmra.mxu0 %v67
    %v695 = vpop.f32.mrf.mxu0
    %v696 = vadd.f32 %v583, %v695
    %697 = vmatmul.f32.gmra.mxu0 %v69
    %v698 = vpop.f32.mrf.mxu0
    %v699 = vadd.f32 %v586, %v698
    %700 = vmatmul.f32.gmra.mxu0 %v71
    %v701 = vpop.f32.mrf.mxu0
    %v702 = vadd.f32 %v589, %v701
    %703 = vmatmul.f32.gmra.mxu0 %v73
    %v704 = vpop.f32.mrf.mxu0
    %v705 = vadd.f32 %v592, %v704
    %706 = vmatmul.f32.gmra.mxu0 %v75
    %v707 = vpop.f32.mrf.mxu0
    %v708 = vadd.f32 %v595, %v707
    %709 = vmatmul.f32.gmra.mxu0 %v77
    %v710 = vpop.f32.mrf.mxu0
    %v711 = vadd.f32 %v598, %v710
    %712 = vmatmul.f32.gmra.mxu0 %v79
    %v713 = vpop.f32.mrf.mxu0
    %v714 = vadd.f32 %v601, %v713
    %715 = vmatmul.f32.gmra.mxu0 %v81
    %v716 = vpop.f32.mrf.mxu0
    %v717 = vadd.f32 %v604, %v716
    %718 = vmatmul.f32.gmra.mxu0 %v83
    %v719 = vpop.f32.mrf.mxu0
    %v720 = vadd.f32 %v607, %v719
    %721 = vmatmul.f32.gmra.mxu0 %v85
    %v722 = vpop.f32.mrf.mxu0
    %v723 = vadd.f32 %v610, %v722
    %724 = vmatmul.f32.gmra.mxu0 %v87
    %v725 = vpop.f32.mrf.mxu0
    %v726 = vadd.f32 %v613, %v725
    %727 = vmatmul.f32.gmra.mxu0 %v89
    %v728 = vpop.f32.mrf.mxu0
    %v729 = vadd.f32 %v616, %v728
    %730 = vmatmul.f32.gmra.mxu0 %v91
    %v731 = vpop.f32.mrf.mxu0
    %v732 = vadd.f32 %v619, %v731
    %733 = vmatmul.f32.gmra.mxu0 %v93
    %v734 = vpop.f32.mrf.mxu0
    %v735 = vadd.f32 %v622, %v734
    %736 = vmatmul.f32.gmra.mxu0 %v95
    %v737 = vpop.f32.mrf.mxu0
    %v738 = vadd.f32 %v625, %v737
    %739 = vmatmul.f32.gmra.mxu0 %v97
    %v740 = vpop.f32.mrf.mxu0
    %v741 = vadd.f32 %v628, %v740
    %742 = vmatmul.f32.gmra.mxu0 %v99
    %v743 = vpop.f32.mrf.mxu0
    %v744 = vadd.f32 %v631, %v743
    %745 = vmatmul.f32.gmra.mxu0 %v101
    %v746 = vpop.f32.mrf.mxu0
    %v747 = vadd.f32 %v634, %v746
    %748 = vmatmul.f32.gmra.mxu0 %v103
    %v749 = vpop.f32.mrf.mxu0
    %v750 = vadd.f32 %v637, %v749
    %751 = vmatmul.f32.gmra.mxu0 %v105
    %v752 = vpop.f32.mrf.mxu0
    %v753 = vadd.f32 %v640, %v752
    %754 = vmatmul.f32.gmra.mxu0 %v107
    %v755 = vpop.f32.mrf.mxu0
    %v756 = vadd.f32 %v643, %v755
    %757 = vmatmul.f32.gmra.mxu0 %v109
    %v758 = vpop.f32.mrf.mxu0
    %v759 = vadd.f32 %v646, %v758
    %760 = vmatmul.f32.gmra.mxu0 %v111
    %v761 = vpop.f32.mrf.mxu0
    %v762 = vadd.f32 %v649, %v761
    %763 = vmatmul.f32.gmra.mxu0 %v113
    %v764 = vpop.f32.mrf.mxu0
    %v765 = vadd.f32 %v652, %v764
    %766 = vmatmul.f32.gmra.mxu0 %v115
    %v767 = vpop.f32.mrf.mxu0
    %v768 = vadd.f32 %v655, %v767
    %769 = vmatmul.f32.gmra.mxu0 %v117
    %v770 = vpop.f32.mrf.mxu0
    %v771 = vadd.f32 %v658, %v770
    %772 = vmatmul.f32.gmra.mxu0 %v119
    %v773 = vpop.f32.mrf.mxu0
    %v774 = vadd.f32 %v661, %v773
    %775 = vmatmul.f32.gmra.mxu0 %v121
    %v776 = vpop.f32.mrf.mxu0
    %v777 = vadd.f32 %v664, %v776
    %778 = vmatmul.f32.gmra.mxu0 %v123
    %v779 = vpop.f32.mrf.mxu0
    %v780 = vadd.f32 %v667, %v779
    %781 = vdwg.mxu0
    %782 = vmatpush.msra.mxu0 %v216
    %783 = vmatpush.msra.mxu0 %v210
    %784 = vmatpush.msra.mxu0 %v204
    %785 = vmatpush.msra.mxu0 %v198
    %786 = vmatpush.msra.mxu0 %v192
    %787 = vmatpush.msra.mxu0 %v186
    %788 = vmatpush.msra.mxu0 %v180
    %789 = vmatpush.msra.mxu0 %v174
    %790 = vmatpush.msra.mxu0 %v168
    %791 = vmatpush.msra.mxu0 %v162
    %792 = vmatpush.msra.mxu0 %v156
    %793 = vmatpush.msra.mxu0 %v150
    %794 = vmatpush.msra.mxu0 %v144
    %795 = vmatpush.msra.mxu0 %v138
    %796 = vmatpush.msra.mxu0 %v132
    %797 = vmatpush.msra.mxu0 %v126
    %798 = vmatmul.f32.gmra.mxu0 %v60
    %v799 = vpop.f32.mrf.mxu0
    %v800 = vadd.f32 %v320, %v799
    %801 = vmatmul.f32.gmra.mxu0 %v62
    %v802 = vpop.f32.mrf.mxu0
    %v803 = vadd.f32 %v320, %v802
    %804 = vmatmul.f32.gmra.mxu0 %v64
    %v805 = vpop.f32.mrf.mxu0
    %v806 = vadd.f32 %v320, %v805
    %807 = vmatmul.f32.gmra.mxu0 %v66
    %v808 = vpop.f32.mrf.mxu0
    %v809 = vadd.f32 %v320, %v808
    %810 = vmatmul.f32.gmra.mxu0 %v68
    %v811 = vpop.f32.mrf.mxu0
    %v812 = vadd.f32 %v320, %v811
    %813 = vmatmul.f32.gmra.mxu0 %v70
    %v814 = vpop.f32.mrf.mxu0
    %v815 = vadd.f32 %v320, %v814
    %816 = vmatmul.f32.gmra.mxu0 %v72
    %v817 = vpop.f32.mrf.mxu0
    %v818 = vadd.f32 %v320, %v817
    %819 = vmatmul.f32.gmra.mxu0 %v74
    %v820 = vpop.f32.mrf.mxu0
    %v821 = vadd.f32 %v320, %v820
    %822 = vmatmul.f32.gmra.mxu0 %v76
    %v823 = vpop.f32.mrf.mxu0
    %v824 = vadd.f32 %v320, %v823
    %825 = vmatmul.f32.gmra.mxu0 %v78
    %v826 = vpop.f32.mrf.mxu0
    %v827 = vadd.f32 %v320, %v826
    %828 = vmatmul.f32.gmra.mxu0 %v80
    %v829 = vpop.f32.mrf.mxu0
    %v830 = vadd.f32 %v320, %v829
    %831 = vmatmul.f32.gmra.mxu0 %v82
    %v832 = vpop.f32.mrf.mxu0
    %v833 = vadd.f32 %v320, %v832
    %834 = vmatmul.f32.gmra.mxu0 %v84
    %v835 = vpop.f32.mrf.mxu0
    %v836 = vadd.f32 %v320, %v835
    %837 = vmatmul.f32.gmra.mxu0 %v86
    %v838 = vpop.f32.mrf.mxu0
    %v839 = vadd.f32 %v320, %v838
    %840 = vmatmul.f32.gmra.mxu0 %v88
    %v841 = vpop.f32.mrf.mxu0
    %v842 = vadd.f32 %v320, %v841
    %843 = vmatmul.f32.gmra.mxu0 %v90
    %v844 = vpop.f32.mrf.mxu0
    %v845 = vadd.f32 %v320, %v844
    %846 = vmatmul.f32.gmra.mxu0 %v92
    %v847 = vpop.f32.mrf.mxu0
    %v848 = vadd.f32 %v320, %v847
    %849 = vmatmul.f32.gmra.mxu0 %v94
    %v850 = vpop.f32.mrf.mxu0
    %v851 = vadd.f32 %v320, %v850
    %852 = vmatmul.f32.gmra.mxu0 %v96
    %v853 = vpop.f32.mrf.mxu0
    %v854 = vadd.f32 %v320, %v853
    %855 = vmatmul.f32.gmra.mxu0 %v98
    %v856 = vpop.f32.mrf.mxu0
    %v857 = vadd.f32 %v320, %v856
    %858 = vmatmul.f32.gmra.mxu0 %v100
    %v859 = vpop.f32.mrf.mxu0
    %v860 = vadd.f32 %v320, %v859
    %861 = vmatmul.f32.gmra.mxu0 %v102
    %v862 = vpop.f32.mrf.mxu0
    %v863 = vadd.f32 %v320, %v862
    %864 = vmatmul.f32.gmra.mxu0 %v104
    %v865 = vpop.f32.mrf.mxu0
    %v866 = vadd.f32 %v320, %v865
    %867 = vmatmul.f32.gmra.mxu0 %v106
    %v868 = vpop.f32.mrf.mxu0
    %v869 = vadd.f32 %v320, %v868
    %870 = vmatmul.f32.gmra.mxu0 %v108
    %v871 = vpop.f32.mrf.mxu0
    %v872 = vadd.f32 %v320, %v871
    %873 = vmatmul.f32.gmra.mxu0 %v110
    %v874 = vpop.f32.mrf.mxu0
    %v875 = vadd.f32 %v320, %v874
    %876 = vmatmul.f32.gmra.mxu0 %v112
    %v877 = vpop.f32.mrf.mxu0
    %v878 = vadd.f32 %v320, %v877
    %879 = vmatmul.f32.gmra.mxu0 %v114
    %v880 = vpop.f32.mrf.mxu0
    %v881 = vadd.f32 %v320, %v880
    %882 = vmatmul.f32.gmra.mxu0 %v116
    %v883 = vpop.f32.mrf.mxu0
    %v884 = vadd.f32 %v320, %v883
    %885 = vmatmul.f32.gmra.mxu0 %v118
    %v886 = vpop.f32.mrf.mxu0
    %v887 = vadd.f32 %v320, %v886
    %888 = vmatmul.f32.gmra.mxu0 %v120
    %v889 = vpop.f32.mrf.mxu0
    %v890 = vadd.f32 %v320, %v889
    %891 = vmatmul.f32.gmra.mxu0 %v122
    %v892 = vpop.f32.mrf.mxu0
    %v893 = vadd.f32 %v320, %v892
    %894 = vdwg.mxu0
    %895 = vmatpush.msra.mxu0 %v312
    %896 = vmatpush.msra.mxu0 %v306
    %897 = vmatpush.msra.mxu0 %v300
    %898 = vmatpush.msra.mxu0 %v294
    %899 = vmatpush.msra.mxu0 %v288
    %900 = vmatpush.msra.mxu0 %v282
    %901 = vmatpush.msra.mxu0 %v276
    %902 = vmatpush.msra.mxu0 %v270
    %903 = vmatpush.msra.mxu0 %v264
    %904 = vmatpush.msra.mxu0 %v258
    %905 = vmatpush.msra.mxu0 %v252
    %906 = vmatpush.msra.mxu0 %v246
    %907 = vmatpush.msra.mxu0 %v240
    %908 = vmatpush.msra.mxu0 %v234
    %909 = vmatpush.msra.mxu0 %v228
    %910 = vmatpush.msra.mxu0 %v222
    %911 = vmatmul.f32.gmra.mxu0 %v61
    %v912 = vpop.f32.mrf.mxu0
    %v913 = vadd.f32 %v800, %v912
    %914 = vmatmul.f32.gmra.mxu0 %v63
    %v915 = vpop.f32.mrf.mxu0
    %v916 = vadd.f32 %v803, %v915
    %917 = vmatmul.f32.gmra.mxu0 %v65
    %v918 = vpop.f32.mrf.mxu0
    %v919 = vadd.f32 %v806, %v918
    %920 = vmatmul.f32.gmra.mxu0 %v67
    %v921 = vpop.f32.mrf.mxu0
    %v922 = vadd.f32 %v809, %v921
    %923 = vmatmul.f32.gmra.mxu0 %v69
    %v924 = vpop.f32.mrf.mxu0
    %v925 = vadd.f32 %v812, %v924
    %926 = vmatmul.f32.gmra.mxu0 %v71
    %v927 = vpop.f32.mrf.mxu0
    %v928 = vadd.f32 %v815, %v927
    %929 = vmatmul.f32.gmra.mxu0 %v73
    %v930 = vpop.f32.mrf.mxu0
    %v931 = vadd.f32 %v818, %v930
    %932 = vmatmul.f32.gmra.mxu0 %v75
    %v933 = vpop.f32.mrf.mxu0
    %v934 = vadd.f32 %v821, %v933
    %935 = vmatmul.f32.gmra.mxu0 %v77
    %v936 = vpop.f32.mrf.mxu0
    %v937 = vadd.f32 %v824, %v936
    %938 = vmatmul.f32.gmra.mxu0 %v79
    %v939 = vpop.f32.mrf.mxu0
    %v940 = vadd.f32 %v827, %v939
    %941 = vmatmul.f32.gmra.mxu0 %v81
    %v942 = vpop.f32.mrf.mxu0
    %v943 = vadd.f32 %v830, %v942
    %944 = vmatmul.f32.gmra.mxu0 %v83
    %v945 = vpop.f32.mrf.mxu0
    %v946 = vadd.f32 %v833, %v945
    %947 = vmatmul.f32.gmra.mxu0 %v85
    %v948 = vpop.f32.mrf.mxu0
    %v949 = vadd.f32 %v836, %v948
    %950 = vmatmul.f32.gmra.mxu0 %v87
    %v951 = vpop.f32.mrf.mxu0
    %v952 = vadd.f32 %v839, %v951
    %953 = vmatmul.f32.gmra.mxu0 %v89
    %v954 = vpop.f32.mrf.mxu0
    %v955 = vadd.f32 %v842, %v954
    %956 = vmatmul.f32.gmra.mxu0 %v91
    %v957 = vpop.f32.mrf.mxu0
    %v958 = vadd.f32 %v845, %v957
    %959 = vmatmul.f32.gmra.mxu0 %v93
    %v960 = vpop.f32.mrf.mxu0
    %v961 = vadd.f32 %v848, %v960
    %962 = vmatmul.f32.gmra.mxu0 %v95
    %v963 = vpop.f32.mrf.mxu0
    %v964 = vadd.f32 %v851, %v963
    %965 = vmatmul.f32.gmra.mxu0 %v97
    %v966 = vpop.f32.mrf.mxu0
    %v967 = vadd.f32 %v854, %v966
    %968 = vmatmul.f32.gmra.mxu0 %v99
    %v969 = vpop.f32.mrf.mxu0
    %v970 = vadd.f32 %v857, %v969
    %971 = vmatmul.f32.gmra.mxu0 %v101
    %v972 = vpop.f32.mrf.mxu0
    %v973 = vadd.f32 %v860, %v972
    %974 = vmatmul.f32.gmra.mxu0 %v103
    %v975 = vpop.f32.mrf.mxu0
    %v976 = vadd.f32 %v863, %v975
    %977 = vmatmul.f32.gmra.mxu0 %v105
    %v978 = vpop.f32.mrf.mxu0
    %v979 = vadd.f32 %v866, %v978
    %980 = vmatmul.f32.gmra.mxu0 %v107
    %v981 = vpop.f32.mrf.mxu0
    %v982 = vadd.f32 %v869, %v981
    %983 = vmatmul.f32.gmra.mxu0 %v109
    %v984 = vpop.f32.mrf.mxu0
    %v985 = vadd.f32 %v872, %v984
    %986 = vmatmul.f32.gmra.mxu0 %v111
    %v987 = vpop.f32.mrf.mxu0
    %v988 = vadd.f32 %v875, %v987
    %989 = vmatmul.f32.gmra.mxu0 %v113
    %v990 = vpop.f32.mrf.mxu0
    %v991 = vadd.f32 %v878, %v990
    %992 = vmatmul.f32.gmra.mxu0 %v115
    %v993 = vpop.f32.mrf.mxu0
    %v994 = vadd.f32 %v881, %v993
    %995 = vmatmul.f32.gmra.mxu0 %v117
    %v996 = vpop.f32.mrf.mxu0
    %v997 = vadd.f32 %v884, %v996
    %998 = vmatmul.f32.gmra.mxu0 %v119
    %v999 = vpop.f32.mrf.mxu0
    %v1000 = vadd.f32 %v887, %v999
    %1001 = vmatmul.f32.gmra.mxu0 %v121
    %v1002 = vpop.f32.mrf.mxu0
    %v1003 = vadd.f32 %v890, %v1002
    %1004 = vmatmul.f32.gmra.mxu0 %v123
    %v1005 = vpop.f32.mrf.mxu0
    %v1006 = vadd.f32 %v893, %v1005
    %1007 = vdwg.mxu0
    %1008 = vmatpush.msra.mxu0 %v217
    %1009 = vmatpush.msra.mxu0 %v211
    %1010 = vmatpush.msra.mxu0 %v205
    %1011 = vmatpush.msra.mxu0 %v199
    %1012 = vmatpush.msra.mxu0 %v193
    %1013 = vmatpush.msra.mxu0 %v187
    %1014 = vmatpush.msra.mxu0 %v181
    %1015 = vmatpush.msra.mxu0 %v175
    %1016 = vmatpush.msra.mxu0 %v169
    %1017 = vmatpush.msra.mxu0 %v163
    %1018 = vmatpush.msra.mxu0 %v157
    %1019 = vmatpush.msra.mxu0 %v151
    %1020 = vmatpush.msra.mxu0 %v145
    %1021 = vmatpush.msra.mxu0 %v139
    %1022 = vmatpush.msra.mxu0 %v133
    %1023 = vmatpush.msra.mxu0 %v127
    %1024 = vmatmul.f32.gmra.mxu0 %v60
    %v1025 = vpop.f32.mrf.mxu0
    %v1026 = vadd.f32 %v321, %v1025
    %1027 = vmatmul.f32.gmra.mxu0 %v62
    %v1028 = vpop.f32.mrf.mxu0
    %v1029 = vadd.f32 %v321, %v1028
    %1030 = vmatmul.f32.gmra.mxu0 %v64
    %v1031 = vpop.f32.mrf.mxu0
    %v1032 = vadd.f32 %v321, %v1031
    %1033 = vmatmul.f32.gmra.mxu0 %v66
    %v1034 = vpop.f32.mrf.mxu0
    %v1035 = vadd.f32 %v321, %v1034
    %1036 = vmatmul.f32.gmra.mxu0 %v68
    %v1037 = vpop.f32.mrf.mxu0
    %v1038 = vadd.f32 %v321, %v1037
    %1039 = vmatmul.f32.gmra.mxu0 %v70
    %v1040 = vpop.f32.mrf.mxu0
    %v1041 = vadd.f32 %v321, %v1040
    %1042 = vmatmul.f32.gmra.mxu0 %v72
    %v1043 = vpop.f32.mrf.mxu0
    %v1044 = vadd.f32 %v321, %v1043
    %1045 = vmatmul.f32.gmra.mxu0 %v74
    %v1046 = vpop.f32.mrf.mxu0
    %v1047 = vadd.f32 %v321, %v1046
    %1048 = vmatmul.f32.gmra.mxu0 %v76
    %v1049 = vpop.f32.mrf.mxu0
    %v1050 = vadd.f32 %v321, %v1049
    %1051 = vmatmul.f32.gmra.mxu0 %v78
    %v1052 = vpop.f32.mrf.mxu0
    %v1053 = vadd.f32 %v321, %v1052
    %1054 = vmatmul.f32.gmra.mxu0 %v80
    %v1055 = vpop.f32.mrf.mxu0
    %v1056 = vadd.f32 %v321, %v1055
    %1057 = vmatmul.f32.gmra.mxu0 %v82
    %v1058 = vpop.f32.mrf.mxu0
    %v1059 = vadd.f32 %v321, %v1058
    %1060 = vmatmul.f32.gmra.mxu0 %v84
    %v1061 = vpop.f32.mrf.mxu0
    %v1062 = vadd.f32 %v321, %v1061
    %1063 = vmatmul.f32.gmra.mxu0 %v86
    %v1064 = vpop.f32.mrf.mxu0
    %v1065 = vadd.f32 %v321, %v1064
    %1066 = vmatmul.f32.gmra.mxu0 %v88
    %v1067 = vpop.f32.mrf.mxu0
    %v1068 = vadd.f32 %v321, %v1067
    %1069 = vmatmul.f32.gmra.mxu0 %v90
    %v1070 = vpop.f32.mrf.mxu0
    %v1071 = vadd.f32 %v321, %v1070
    %1072 = vmatmul.f32.gmra.mxu0 %v92
    %v1073 = vpop.f32.mrf.mxu0
    %v1074 = vadd.f32 %v321, %v1073
    %1075 = vmatmul.f32.gmra.mxu0 %v94
    %v1076 = vpop.f32.mrf.mxu0
    %v1077 = vadd.f32 %v321, %v1076
    %1078 = vmatmul.f32.gmra.mxu0 %v96
    %v1079 = vpop.f32.mrf.mxu0
    %v1080 = vadd.f32 %v321, %v1079
    %1081 = vmatmul.f32.gmra.mxu0 %v98
    %v1082 = vpop.f32.mrf.mxu0
    %v1083 = vadd.f32 %v321, %v1082
    %1084 = vmatmul.f32.gmra.mxu0 %v100
    %v1085 = vpop.f32.mrf.mxu0
    %v1086 = vadd.f32 %v321, %v1085
    %1087 = vmatmul.f32.gmra.mxu0 %v102
    %v1088 = vpop.f32.mrf.mxu0
    %v1089 = vadd.f32 %v321, %v1088
    %1090 = vmatmul.f32.gmra.mxu0 %v104
    %v1091 = vpop.f32.mrf.mxu0
    %v1092 = vadd.f32 %v321, %v1091
    %1093 = vmatmul.f32.gmra.mxu0 %v106
    %v1094 = vpop.f32.mrf.mxu0
    %v1095 = vadd.f32 %v321, %v1094
    %1096 = vmatmul.f32.gmra.mxu0 %v108
    %v1097 = vpop.f32.mrf.mxu0
    %v1098 = vadd.f32 %v321, %v1097
    %1099 = vmatmul.f32.gmra.mxu0 %v110
    %v1100 = vpop.f32.mrf.mxu0
    %v1101 = vadd.f32 %v321, %v1100
    %1102 = vmatmul.f32.gmra.mxu0 %v112
    %v1103 = vpop.f32.mrf.mxu0
    %v1104 = vadd.f32 %v321, %v1103
    %1105 = vmatmul.f32.gmra.mxu0 %v114
    %v1106 = vpop.f32.mrf.mxu0
    %v1107 = vadd.f32 %v321, %v1106
    %1108 = vmatmul.f32.gmra.mxu0 %v116
    %v1109 = vpop.f32.mrf.mxu0
    %v1110 = vadd.f32 %v321, %v1109
    %1111 = vmatmul.f32.gmra.mxu0 %v118
    %v1112 = vpop.f32.mrf.mxu0
    %v1113 = vadd.f32 %v321, %v1112
    %1114 = vmatmul.f32.gmra.mxu0 %v120
    %v1115 = vpop.f32.mrf.mxu0
    %v1116 = vadd.f32 %v321, %v1115
    %1117 = vmatmul.f32.gmra.mxu0 %v122
    %v1118 = vpop.f32.mrf.mxu0
    %v1119 = vadd.f32 %v321, %v1118
    %1120 = vdwg.mxu0
    %1121 = vmatpush.msra.mxu0 %v313
    %1122 = vmatpush.msra.mxu0 %v307
    %1123 = vmatpush.msra.mxu0 %v301
    %1124 = vmatpush.msra.mxu0 %v295
    %1125 = vmatpush.msra.mxu0 %v289
    %1126 = vmatpush.msra.mxu0 %v283
    %1127 = vmatpush.msra.mxu0 %v277
    %1128 = vmatpush.msra.mxu0 %v271
    %1129 = vmatpush.msra.mxu0 %v265
    %1130 = vmatpush.msra.mxu0 %v259
    %1131 = vmatpush.msra.mxu0 %v253
    %1132 = vmatpush.msra.mxu0 %v247
    %1133 = vmatpush.msra.mxu0 %v241
    %1134 = vmatpush.msra.mxu0 %v235
    %1135 = vmatpush.msra.mxu0 %v229
    %1136 = vmatpush.msra.mxu0 %v223
    %1137 = vmatmul.f32.gmra.mxu0 %v61
    %v1138 = vpop.f32.mrf.mxu0
    %v1139 = vadd.f32 %v1026, %v1138
    %1140 = vmatmul.f32.gmra.mxu0 %v63
    %v1141 = vpop.f32.mrf.mxu0
    %v1142 = vadd.f32 %v1029, %v1141
    %1143 = vmatmul.f32.gmra.mxu0 %v65
    %v1144 = vpop.f32.mrf.mxu0
    %v1145 = vadd.f32 %v1032, %v1144
    %1146 = vmatmul.f32.gmra.mxu0 %v67
    %v1147 = vpop.f32.mrf.mxu0
    %v1148 = vadd.f32 %v1035, %v1147
    %1149 = vmatmul.f32.gmra.mxu0 %v69
    %v1150 = vpop.f32.mrf.mxu0
    %v1151 = vadd.f32 %v1038, %v1150
    %1152 = vmatmul.f32.gmra.mxu0 %v71
    %v1153 = vpop.f32.mrf.mxu0
    %v1154 = vadd.f32 %v1041, %v1153
    %1155 = vmatmul.f32.gmra.mxu0 %v73
    %v1156 = vpop.f32.mrf.mxu0
    %v1157 = vadd.f32 %v1044, %v1156
    %1158 = vmatmul.f32.gmra.mxu0 %v75
    %v1159 = vpop.f32.mrf.mxu0
    %v1160 = vadd.f32 %v1047, %v1159
    %1161 = vmatmul.f32.gmra.mxu0 %v77
    %v1162 = vpop.f32.mrf.mxu0
    %v1163 = vadd.f32 %v1050, %v1162
    %1164 = vmatmul.f32.gmra.mxu0 %v79
    %v1165 = vpop.f32.mrf.mxu0
    %v1166 = vadd.f32 %v1053, %v1165
    %1167 = vmatmul.f32.gmra.mxu0 %v81
    %v1168 = vpop.f32.mrf.mxu0
    %v1169 = vadd.f32 %v1056, %v1168
    %1170 = vmatmul.f32.gmra.mxu0 %v83
    %v1171 = vpop.f32.mrf.mxu0
    %v1172 = vadd.f32 %v1059, %v1171
    %1173 = vmatmul.f32.gmra.mxu0 %v85
    %v1174 = vpop.f32.mrf.mxu0
    %v1175 = vadd.f32 %v1062, %v1174
    %1176 = vmatmul.f32.gmra.mxu0 %v87
    %v1177 = vpop.f32.mrf.mxu0
    %v1178 = vadd.f32 %v1065, %v1177
    %1179 = vmatmul.f32.gmra.mxu0 %v89
    %v1180 = vpop.f32.mrf.mxu0
    %v1181 = vadd.f32 %v1068, %v1180
    %1182 = vmatmul.f32.gmra.mxu0 %v91
    %v1183 = vpop.f32.mrf.mxu0
    %v1184 = vadd.f32 %v1071, %v1183
    %1185 = vmatmul.f32.gmra.mxu0 %v93
    %v1186 = vpop.f32.mrf.mxu0
    %v1187 = vadd.f32 %v1074, %v1186
    %1188 = vmatmul.f32.gmra.mxu0 %v95
    %v1189 = vpop.f32.mrf.mxu0
    %v1190 = vadd.f32 %v1077, %v1189
    %1191 = vmatmul.f32.gmra.mxu0 %v97
    %v1192 = vpop.f32.mrf.mxu0
    %v1193 = vadd.f32 %v1080, %v1192
    %1194 = vmatmul.f32.gmra.mxu0 %v99
    %v1195 = vpop.f32.mrf.mxu0
    %v1196 = vadd.f32 %v1083, %v1195
    %1197 = vmatmul.f32.gmra.mxu0 %v101
    %v1198 = vpop.f32.mrf.mxu0
    %v1199 = vadd.f32 %v1086, %v1198
    %1200 = vmatmul.f32.gmra.mxu0 %v103
    %v1201 = vpop.f32.mrf.mxu0
    %v1202 = vadd.f32 %v1089, %v1201
    %1203 = vmatmul.f32.gmra.mxu0 %v105
    %v1204 = vpop.f32.mrf.mxu0
    %v1205 = vadd.f32 %v1092, %v1204
    %1206 = vmatmul.f32.gmra.mxu0 %v107
    %v1207 = vpop.f32.mrf.mxu0
    %v1208 = vadd.f32 %v1095, %v1207
    %1209 = vmatmul.f32.gmra.mxu0 %v109
    %v1210 = vpop.f32.mrf.mxu0
    %v1211 = vadd.f32 %v1098, %v1210
    %1212 = vmatmul.f32.gmra.mxu0 %v111
    %v1213 = vpop.f32.mrf.mxu0
    %v1214 = vadd.f32 %v1101, %v1213
    %1215 = vmatmul.f32.gmra.mxu0 %v113
    %v1216 = vpop.f32.mrf.mxu0
    %v1217 = vadd.f32 %v1104, %v1216
    %1218 = vmatmul.f32.gmra.mxu0 %v115
    %v1219 = vpop.f32.mrf.mxu0
    %v1220 = vadd.f32 %v1107, %v1219
    %1221 = vmatmul.f32.gmra.mxu0 %v117
    %v1222 = vpop.f32.mrf.mxu0
    %v1223 = vadd.f32 %v1110, %v1222
    %1224 = vmatmul.f32.gmra.mxu0 %v119
    %v1225 = vpop.f32.mrf.mxu0
    %v1226 = vadd.f32 %v1113, %v1225
    %1227 = vmatmul.f32.gmra.mxu0 %v121
    %v1228 = vpop.f32.mrf.mxu0
    %v1229 = vadd.f32 %v1116, %v1228
    %1230 = vmatmul.f32.gmra.mxu0 %v123
    %v1231 = vpop.f32.mrf.mxu0
    %v1232 = vadd.f32 %v1119, %v1231
    %1233 = vdwg.mxu0
    %1234 = vmatpush.msra.mxu0 %v218
    %1235 = vmatpush.msra.mxu0 %v212
    %1236 = vmatpush.msra.mxu0 %v206
    %1237 = vmatpush.msra.mxu0 %v200
    %1238 = vmatpush.msra.mxu0 %v194
    %1239 = vmatpush.msra.mxu0 %v188
    %1240 = vmatpush.msra.mxu0 %v182
    %1241 = vmatpush.msra.mxu0 %v176
    %1242 = vmatpush.msra.mxu0 %v170
    %1243 = vmatpush.msra.mxu0 %v164
    %1244 = vmatpush.msra.mxu0 %v158
    %1245 = vmatpush.msra.mxu0 %v152
    %1246 = vmatpush.msra.mxu0 %v146
    %1247 = vmatpush.msra.mxu0 %v140
    %1248 = vmatpush.msra.mxu0 %v134
    %1249 = vmatpush.msra.mxu0 %v128
    %1250 = vmatmul.f32.gmra.mxu0 %v60
    %v1251 = vpop.f32.mrf.mxu0
    %v1252 = vadd.f32 %v322, %v1251
    %1253 = vmatmul.f32.gmra.mxu0 %v62
    %v1254 = vpop.f32.mrf.mxu0
    %v1255 = vadd.f32 %v322, %v1254
    %1256 = vmatmul.f32.gmra.mxu0 %v64
    %v1257 = vpop.f32.mrf.mxu0
    %v1258 = vadd.f32 %v322, %v1257
    %1259 = vmatmul.f32.gmra.mxu0 %v66
    %v1260 = vpop.f32.mrf.mxu0
    %v1261 = vadd.f32 %v322, %v1260
    %1262 = vmatmul.f32.gmra.mxu0 %v68
    %v1263 = vpop.f32.mrf.mxu0
    %v1264 = vadd.f32 %v322, %v1263
    %1265 = vmatmul.f32.gmra.mxu0 %v70
    %v1266 = vpop.f32.mrf.mxu0
    %v1267 = vadd.f32 %v322, %v1266
    %1268 = vmatmul.f32.gmra.mxu0 %v72
    %v1269 = vpop.f32.mrf.mxu0
    %v1270 = vadd.f32 %v322, %v1269
    %1271 = vmatmul.f32.gmra.mxu0 %v74
    %v1272 = vpop.f32.mrf.mxu0
    %v1273 = vadd.f32 %v322, %v1272
    %1274 = vmatmul.f32.gmra.mxu0 %v76
    %v1275 = vpop.f32.mrf.mxu0
    %v1276 = vadd.f32 %v322, %v1275
    %1277 = vmatmul.f32.gmra.mxu0 %v78
    %v1278 = vpop.f32.mrf.mxu0
    %v1279 = vadd.f32 %v322, %v1278
    %1280 = vmatmul.f32.gmra.mxu0 %v80
    %v1281 = vpop.f32.mrf.mxu0
    %v1282 = vadd.f32 %v322, %v1281
    %1283 = vmatmul.f32.gmra.mxu0 %v82
    %v1284 = vpop.f32.mrf.mxu0
    %v1285 = vadd.f32 %v322, %v1284
    %1286 = vmatmul.f32.gmra.mxu0 %v84
    %v1287 = vpop.f32.mrf.mxu0
    %v1288 = vadd.f32 %v322, %v1287
    %1289 = vmatmul.f32.gmra.mxu0 %v86
    %v1290 = vpop.f32.mrf.mxu0
    %v1291 = vadd.f32 %v322, %v1290
    %1292 = vmatmul.f32.gmra.mxu0 %v88
    %v1293 = vpop.f32.mrf.mxu0
    %v1294 = vadd.f32 %v322, %v1293
    %1295 = vmatmul.f32.gmra.mxu0 %v90
    %v1296 = vpop.f32.mrf.mxu0
    %v1297 = vadd.f32 %v322, %v1296
    %1298 = vmatmul.f32.gmra.mxu0 %v92
    %v1299 = vpop.f32.mrf.mxu0
    %v1300 = vadd.f32 %v322, %v1299
    %1301 = vmatmul.f32.gmra.mxu0 %v94
    %v1302 = vpop.f32.mrf.mxu0
    %v1303 = vadd.f32 %v322, %v1302
    %1304 = vmatmul.f32.gmra.mxu0 %v96
    %v1305 = vpop.f32.mrf.mxu0
    %v1306 = vadd.f32 %v322, %v1305
    %1307 = vmatmul.f32.gmra.mxu0 %v98
    %v1308 = vpop.f32.mrf.mxu0
    %v1309 = vadd.f32 %v322, %v1308
    %1310 = vmatmul.f32.gmra.mxu0 %v100
    %v1311 = vpop.f32.mrf.mxu0
    %v1312 = vadd.f32 %v322, %v1311
    %1313 = vmatmul.f32.gmra.mxu0 %v102
    %v1314 = vpop.f32.mrf.mxu0
    %v1315 = vadd.f32 %v322, %v1314
    %1316 = vmatmul.f32.gmra.mxu0 %v104
    %v1317 = vpop.f32.mrf.mxu0
    %v1318 = vadd.f32 %v322, %v1317
    %1319 = vmatmul.f32.gmra.mxu0 %v106
    %v1320 = vpop.f32.mrf.mxu0
    %v1321 = vadd.f32 %v322, %v1320
    %1322 = vmatmul.f32.gmra.mxu0 %v108
    %v1323 = vpop.f32.mrf.mxu0
    %v1324 = vadd.f32 %v322, %v1323
    %1325 = vmatmul.f32.gmra.mxu0 %v110
    %v1326 = vpop.f32.mrf.mxu0
    %v1327 = vadd.f32 %v322, %v1326
    %1328 = vmatmul.f32.gmra.mxu0 %v112
    %v1329 = vpop.f32.mrf.mxu0
    %v1330 = vadd.f32 %v322, %v1329
    %1331 = vmatmul.f32.gmra.mxu0 %v114
    %v1332 = vpop.f32.mrf.mxu0
    %v1333 = vadd.f32 %v322, %v1332
    %1334 = vmatmul.f32.gmra.mxu0 %v116
    %v1335 = vpop.f32.mrf.mxu0
    %v1336 = vadd.f32 %v322, %v1335
    %1337 = vmatmul.f32.gmra.mxu0 %v118
    %v1338 = vpop.f32.mrf.mxu0
    %v1339 = vadd.f32 %v322, %v1338
    %1340 = vmatmul.f32.gmra.mxu0 %v120
    %v1341 = vpop.f32.mrf.mxu0
    %v1342 = vadd.f32 %v322, %v1341
    %1343 = vmatmul.f32.gmra.mxu0 %v122
    %v1344 = vpop.f32.mrf.mxu0
    %v1345 = vadd.f32 %v322, %v1344
    %1346 = vdwg.mxu0
    %1347 = vmatpush.msra.mxu0 %v314
    %1348 = vmatpush.msra.mxu0 %v308
    %1349 = vmatpush.msra.mxu0 %v302
    %1350 = vmatpush.msra.mxu0 %v296
    %1351 = vmatpush.msra.mxu0 %v290
    %1352 = vmatpush.msra.mxu0 %v284
    %1353 = vmatpush.msra.mxu0 %v278
    %1354 = vmatpush.msra.mxu0 %v272
    %1355 = vmatpush.msra.mxu0 %v266
    %1356 = vmatpush.msra.mxu0 %v260
    %1357 = vmatpush.msra.mxu0 %v254
    %1358 = vmatpush.msra.mxu0 %v248
    %1359 = vmatpush.msra.mxu0 %v242
    %1360 = vmatpush.msra.mxu0 %v236
    %1361 = vmatpush.msra.mxu0 %v230
    %1362 = vmatpush.msra.mxu0 %v224
    %1363 = vmatmul.f32.gmra.mxu0 %v61
    %v1364 = vpop.f32.mrf.mxu0
    %v1365 = vadd.f32 %v1252, %v1364
    %1366 = vmatmul.f32.gmra.mxu0 %v63
    %v1367 = vpop.f32.mrf.mxu0
    %v1368 = vadd.f32 %v1255, %v1367
    %1369 = vmatmul.f32.gmra.mxu0 %v65
    %v1370 = vpop.f32.mrf.mxu0
    %v1371 = vadd.f32 %v1258, %v1370
    %1372 = vmatmul.f32.gmra.mxu0 %v67
    %v1373 = vpop.f32.mrf.mxu0
    %v1374 = vadd.f32 %v1261, %v1373
    %1375 = vmatmul.f32.gmra.mxu0 %v69
    %v1376 = vpop.f32.mrf.mxu0
    %v1377 = vadd.f32 %v1264, %v1376
    %1378 = vmatmul.f32.gmra.mxu0 %v71
    %v1379 = vpop.f32.mrf.mxu0
    %v1380 = vadd.f32 %v1267, %v1379
    %1381 = vmatmul.f32.gmra.mxu0 %v73
    %v1382 = vpop.f32.mrf.mxu0
    %v1383 = vadd.f32 %v1270, %v1382
    %1384 = vmatmul.f32.gmra.mxu0 %v75
    %v1385 = vpop.f32.mrf.mxu0
    %v1386 = vadd.f32 %v1273, %v1385
    %1387 = vmatmul.f32.gmra.mxu0 %v77
    %v1388 = vpop.f32.mrf.mxu0
    %v1389 = vadd.f32 %v1276, %v1388
    %1390 = vmatmul.f32.gmra.mxu0 %v79
    %v1391 = vpop.f32.mrf.mxu0
    %v1392 = vadd.f32 %v1279, %v1391
    %1393 = vmatmul.f32.gmra.mxu0 %v81
    %v1394 = vpop.f32.mrf.mxu0
    %v1395 = vadd.f32 %v1282, %v1394
    %1396 = vmatmul.f32.gmra.mxu0 %v83
    %v1397 = vpop.f32.mrf.mxu0
    %v1398 = vadd.f32 %v1285, %v1397
    %1399 = vmatmul.f32.gmra.mxu0 %v85
    %v1400 = vpop.f32.mrf.mxu0
    %v1401 = vadd.f32 %v1288, %v1400
    %1402 = vmatmul.f32.gmra.mxu0 %v87
    %v1403 = vpop.f32.mrf.mxu0
    %v1404 = vadd.f32 %v1291, %v1403
    %1405 = vmatmul.f32.gmra.mxu0 %v89
    %v1406 = vpop.f32.mrf.mxu0
    %v1407 = vadd.f32 %v1294, %v1406
    %1408 = vmatmul.f32.gmra.mxu0 %v91
    %v1409 = vpop.f32.mrf.mxu0
    %v1410 = vadd.f32 %v1297, %v1409
    %1411 = vmatmul.f32.gmra.mxu0 %v93
    %v1412 = vpop.f32.mrf.mxu0
    %v1413 = vadd.f32 %v1300, %v1412
    %1414 = vmatmul.f32.gmra.mxu0 %v95
    %v1415 = vpop.f32.mrf.mxu0
    %v1416 = vadd.f32 %v1303, %v1415
    %1417 = vmatmul.f32.gmra.mxu0 %v97
    %v1418 = vpop.f32.mrf.mxu0
    %v1419 = vadd.f32 %v1306, %v1418
    %1420 = vmatmul.f32.gmra.mxu0 %v99
    %v1421 = vpop.f32.mrf.mxu0
    %v1422 = vadd.f32 %v1309, %v1421
    %1423 = vmatmul.f32.gmra.mxu0 %v101
    %v1424 = vpop.f32.mrf.mxu0
    %v1425 = vadd.f32 %v1312, %v1424
    %1426 = vmatmul.f32.gmra.mxu0 %v103
    %v1427 = vpop.f32.mrf.mxu0
    %v1428 = vadd.f32 %v1315, %v1427
    %1429 = vmatmul.f32.gmra.mxu0 %v105
    %v1430 = vpop.f32.mrf.mxu0
    %v1431 = vadd.f32 %v1318, %v1430
    %1432 = vmatmul.f32.gmra.mxu0 %v107
    %v1433 = vpop.f32.mrf.mxu0
    %v1434 = vadd.f32 %v1321, %v1433
    %1435 = vmatmul.f32.gmra.mxu0 %v109
    %v1436 = vpop.f32.mrf.mxu0
    %v1437 = vadd.f32 %v1324, %v1436
    %1438 = vmatmul.f32.gmra.mxu0 %v111
    %v1439 = vpop.f32.mrf.mxu0
    %v1440 = vadd.f32 %v1327, %v1439
    %1441 = vmatmul.f32.gmra.mxu0 %v113
    %v1442 = vpop.f32.mrf.mxu0
    %v1443 = vadd.f32 %v1330, %v1442
    %1444 = vmatmul.f32.gmra.mxu0 %v115
    %v1445 = vpop.f32.mrf.mxu0
    %v1446 = vadd.f32 %v1333, %v1445
    %1447 = vmatmul.f32.gmra.mxu0 %v117
    %v1448 = vpop.f32.mrf.mxu0
    %v1449 = vadd.f32 %v1336, %v1448
    %1450 = vmatmul.f32.gmra.mxu0 %v119
    %v1451 = vpop.f32.mrf.mxu0
    %v1452 = vadd.f32 %v1339, %v1451
    %1453 = vmatmul.f32.gmra.mxu0 %v121
    %v1454 = vpop.f32.mrf.mxu0
    %v1455 = vadd.f32 %v1342, %v1454
    %1456 = vmatmul.f32.gmra.mxu0 %v123
    %v1457 = vpop.f32.mrf.mxu0
    %v1458 = vadd.f32 %v1345, %v1457
    %1459 = vdwg.mxu0
    %1460 = vmatpush.msra.mxu0 %v219
    %1461 = vmatpush.msra.mxu0 %v213
    %1462 = vmatpush.msra.mxu0 %v207
    %1463 = vmatpush.msra.mxu0 %v201
    %1464 = vmatpush.msra.mxu0 %v195
    %1465 = vmatpush.msra.mxu0 %v189
    %1466 = vmatpush.msra.mxu0 %v183
    %1467 = vmatpush.msra.mxu0 %v177
    %1468 = vmatpush.msra.mxu0 %v171
    %1469 = vmatpush.msra.mxu0 %v165
    %1470 = vmatpush.msra.mxu0 %v159
    %1471 = vmatpush.msra.mxu0 %v153
    %1472 = vmatpush.msra.mxu0 %v147
    %1473 = vmatpush.msra.mxu0 %v141
    %1474 = vmatpush.msra.mxu0 %v135
    %1475 = vmatpush.msra.mxu0 %v129
    %1476 = vmatmul.f32.gmra.mxu0 %v60
    %v1477 = vpop.f32.mrf.mxu0
    %v1478 = vadd.f32 %v323, %v1477
    %1479 = vmatmul.f32.gmra.mxu0 %v62
    %v1480 = vpop.f32.mrf.mxu0
    %v1481 = vadd.f32 %v323, %v1480
    %1482 = vmatmul.f32.gmra.mxu0 %v64
    %v1483 = vpop.f32.mrf.mxu0
    %v1484 = vadd.f32 %v323, %v1483
    %1485 = vmatmul.f32.gmra.mxu0 %v66
    %v1486 = vpop.f32.mrf.mxu0
    %v1487 = vadd.f32 %v323, %v1486
    %1488 = vmatmul.f32.gmra.mxu0 %v68
    %v1489 = vpop.f32.mrf.mxu0
    %v1490 = vadd.f32 %v323, %v1489
    %1491 = vmatmul.f32.gmra.mxu0 %v70
    %v1492 = vpop.f32.mrf.mxu0
    %v1493 = vadd.f32 %v323, %v1492
    %1494 = vmatmul.f32.gmra.mxu0 %v72
    %v1495 = vpop.f32.mrf.mxu0
    %v1496 = vadd.f32 %v323, %v1495
    %1497 = vmatmul.f32.gmra.mxu0 %v74
    %v1498 = vpop.f32.mrf.mxu0
    %v1499 = vadd.f32 %v323, %v1498
    %1500 = vmatmul.f32.gmra.mxu0 %v76
    %v1501 = vpop.f32.mrf.mxu0
    %v1502 = vadd.f32 %v323, %v1501
    %1503 = vmatmul.f32.gmra.mxu0 %v78
    %v1504 = vpop.f32.mrf.mxu0
    %v1505 = vadd.f32 %v323, %v1504
    %1506 = vmatmul.f32.gmra.mxu0 %v80
    %v1507 = vpop.f32.mrf.mxu0
    %v1508 = vadd.f32 %v323, %v1507
    %1509 = vmatmul.f32.gmra.mxu0 %v82
    %v1510 = vpop.f32.mrf.mxu0
    %v1511 = vadd.f32 %v323, %v1510
    %1512 = vmatmul.f32.gmra.mxu0 %v84
    %v1513 = vpop.f32.mrf.mxu0
    %v1514 = vadd.f32 %v323, %v1513
    %1515 = vmatmul.f32.gmra.mxu0 %v86
    %v1516 = vpop.f32.mrf.mxu0
    %v1517 = vadd.f32 %v323, %v1516
    %1518 = vmatmul.f32.gmra.mxu0 %v88
    %v1519 = vpop.f32.mrf.mxu0
    %v1520 = vadd.f32 %v323, %v1519
    %1521 = vmatmul.f32.gmra.mxu0 %v90
    %v1522 = vpop.f32.mrf.mxu0
    %v1523 = vadd.f32 %v323, %v1522
    %1524 = vmatmul.f32.gmra.mxu0 %v92
    %v1525 = vpop.f32.mrf.mxu0
    %v1526 = vadd.f32 %v323, %v1525
    %1527 = vmatmul.f32.gmra.mxu0 %v94
    %v1528 = vpop.f32.mrf.mxu0
    %v1529 = vadd.f32 %v323, %v1528
    %1530 = vmatmul.f32.gmra.mxu0 %v96
    %v1531 = vpop.f32.mrf.mxu0
    %v1532 = vadd.f32 %v323, %v1531
    %1533 = vmatmul.f32.gmra.mxu0 %v98
    %v1534 = vpop.f32.mrf.mxu0
    %v1535 = vadd.f32 %v323, %v1534
    %1536 = vmatmul.f32.gmra.mxu0 %v100
    %v1537 = vpop.f32.mrf.mxu0
    %v1538 = vadd.f32 %v323, %v1537
    %1539 = vmatmul.f32.gmra.mxu0 %v102
    %v1540 = vpop.f32.mrf.mxu0
    %v1541 = vadd.f32 %v323, %v1540
    %1542 = vmatmul.f32.gmra.mxu0 %v104
    %v1543 = vpop.f32.mrf.mxu0
    %v1544 = vadd.f32 %v323, %v1543
    %1545 = vmatmul.f32.gmra.mxu0 %v106
    %v1546 = vpop.f32.mrf.mxu0
    %v1547 = vadd.f32 %v323, %v1546
    %1548 = vmatmul.f32.gmra.mxu0 %v108
    %v1549 = vpop.f32.mrf.mxu0
    %v1550 = vadd.f32 %v323, %v1549
    %1551 = vmatmul.f32.gmra.mxu0 %v110
    %v1552 = vpop.f32.mrf.mxu0
    %v1553 = vadd.f32 %v323, %v1552
    %1554 = vmatmul.f32.gmra.mxu0 %v112
    %v1555 = vpop.f32.mrf.mxu0
    %v1556 = vadd.f32 %v323, %v1555
    %1557 = vmatmul.f32.gmra.mxu0 %v114
    %v1558 = vpop.f32.mrf.mxu0
    %v1559 = vadd.f32 %v323, %v1558
    %1560 = vmatmul.f32.gmra.mxu0 %v116
    %v1561 = vpop.f32.mrf.mxu0
    %v1562 = vadd.f32 %v323, %v1561
    %1563 = vmatmul.f32.gmra.mxu0 %v118
    %v1564 = vpop.f32.mrf.mxu0
    %v1565 = vadd.f32 %v323, %v1564
    %1566 = vmatmul.f32.gmra.mxu0 %v120
    %v1567 = vpop.f32.mrf.mxu0
    %v1568 = vadd.f32 %v323, %v1567
    %1569 = vmatmul.f32.gmra.mxu0 %v122
    %v1570 = vpop.f32.mrf.mxu0
    %v1571 = vadd.f32 %v323, %v1570
    %1572 = vdwg.mxu0
    %1573 = vmatpush.msra.mxu0 %v315
    %1574 = vmatpush.msra.mxu0 %v309
    %1575 = vmatpush.msra.mxu0 %v303
    %1576 = vmatpush.msra.mxu0 %v297
    %1577 = vmatpush.msra.mxu0 %v291
    %1578 = vmatpush.msra.mxu0 %v285
    %1579 = vmatpush.msra.mxu0 %v279
    %1580 = vmatpush.msra.mxu0 %v273
    %1581 = vmatpush.msra.mxu0 %v267
    %1582 = vmatpush.msra.mxu0 %v261
    %1583 = vmatpush.msra.mxu0 %v255
    %1584 = vmatpush.msra.mxu0 %v249
    %1585 = vmatpush.msra.mxu0 %v243
    %1586 = vmatpush.msra.mxu0 %v237
    %1587 = vmatpush.msra.mxu0 %v231
    %1588 = vmatpush.msra.mxu0 %v225
    %1589 = vmatmul.f32.gmra.mxu0 %v61
    %v1590 = vpop.f32.mrf.mxu0
    %v1591 = vadd.f32 %v1478, %v1590
    %1592 = vmatmul.f32.gmra.mxu0 %v63
    %v1593 = vpop.f32.mrf.mxu0
    %v1594 = vadd.f32 %v1481, %v1593
    %1595 = vmatmul.f32.gmra.mxu0 %v65
    %v1596 = vpop.f32.mrf.mxu0
    %v1597 = vadd.f32 %v1484, %v1596
    %1598 = vmatmul.f32.gmra.mxu0 %v67
    %v1599 = vpop.f32.mrf.mxu0
    %v1600 = vadd.f32 %v1487, %v1599
    %1601 = vmatmul.f32.gmra.mxu0 %v69
    %v1602 = vpop.f32.mrf.mxu0
    %v1603 = vadd.f32 %v1490, %v1602
    %1604 = vmatmul.f32.gmra.mxu0 %v71
    %v1605 = vpop.f32.mrf.mxu0
    %v1606 = vadd.f32 %v1493, %v1605
    %1607 = vmatmul.f32.gmra.mxu0 %v73
    %v1608 = vpop.f32.mrf.mxu0
    %v1609 = vadd.f32 %v1496, %v1608
    %1610 = vmatmul.f32.gmra.mxu0 %v75
    %v1611 = vpop.f32.mrf.mxu0
    %v1612 = vadd.f32 %v1499, %v1611
    %1613 = vmatmul.f32.gmra.mxu0 %v77
    %v1614 = vpop.f32.mrf.mxu0
    %v1615 = vadd.f32 %v1502, %v1614
    %1616 = vmatmul.f32.gmra.mxu0 %v79
    %v1617 = vpop.f32.mrf.mxu0
    %v1618 = vadd.f32 %v1505, %v1617
    %1619 = vmatmul.f32.gmra.mxu0 %v81
    %v1620 = vpop.f32.mrf.mxu0
    %v1621 = vadd.f32 %v1508, %v1620
    %1622 = vmatmul.f32.gmra.mxu0 %v83
    %v1623 = vpop.f32.mrf.mxu0
    %v1624 = vadd.f32 %v1511, %v1623
    %1625 = vmatmul.f32.gmra.mxu0 %v85
    %v1626 = vpop.f32.mrf.mxu0
    %v1627 = vadd.f32 %v1514, %v1626
    %1628 = vmatmul.f32.gmra.mxu0 %v87
    %v1629 = vpop.f32.mrf.mxu0
    %v1630 = vadd.f32 %v1517, %v1629
    %1631 = vmatmul.f32.gmra.mxu0 %v89
    %v1632 = vpop.f32.mrf.mxu0
    %v1633 = vadd.f32 %v1520, %v1632
    %1634 = vmatmul.f32.gmra.mxu0 %v91
    %v1635 = vpop.f32.mrf.mxu0
    %v1636 = vadd.f32 %v1523, %v1635
    %1637 = vmatmul.f32.gmra.mxu0 %v93
    %v1638 = vpop.f32.mrf.mxu0
    %v1639 = vadd.f32 %v1526, %v1638
    %1640 = vmatmul.f32.gmra.mxu0 %v95
    %v1641 = vpop.f32.mrf.mxu0
    %v1642 = vadd.f32 %v1529, %v1641
    %1643 = vmatmul.f32.gmra.mxu0 %v97
    %v1644 = vpop.f32.mrf.mxu0
    %v1645 = vadd.f32 %v1532, %v1644
    %1646 = vmatmul.f32.gmra.mxu0 %v99
    %v1647 = vpop.f32.mrf.mxu0
    %v1648 = vadd.f32 %v1535, %v1647
    %1649 = vmatmul.f32.gmra.mxu0 %v101
    %v1650 = vpop.f32.mrf.mxu0
    %v1651 = vadd.f32 %v1538, %v1650
    %1652 = vmatmul.f32.gmra.mxu0 %v103
    %v1653 = vpop.f32.mrf.mxu0
    %v1654 = vadd.f32 %v1541, %v1653
    %1655 = vmatmul.f32.gmra.mxu0 %v105
    %v1656 = vpop.f32.mrf.mxu0
    %v1657 = vadd.f32 %v1544, %v1656
    %1658 = vmatmul.f32.gmra.mxu0 %v107
    %v1659 = vpop.f32.mrf.mxu0
    %v1660 = vadd.f32 %v1547, %v1659
    %1661 = vmatmul.f32.gmra.mxu0 %v109
    %v1662 = vpop.f32.mrf.mxu0
    %v1663 = vadd.f32 %v1550, %v1662
    %1664 = vmatmul.f32.gmra.mxu0 %v111
    %v1665 = vpop.f32.mrf.mxu0
    %v1666 = vadd.f32 %v1553, %v1665
    %1667 = vmatmul.f32.gmra.mxu0 %v113
    %v1668 = vpop.f32.mrf.mxu0
    %v1669 = vadd.f32 %v1556, %v1668
    %1670 = vmatmul.f32.gmra.mxu0 %v115
    %v1671 = vpop.f32.mrf.mxu0
    %v1672 = vadd.f32 %v1559, %v1671
    %1673 = vmatmul.f32.gmra.mxu0 %v117
    %v1674 = vpop.f32.mrf.mxu0
    %v1675 = vadd.f32 %v1562, %v1674
    %1676 = vmatmul.f32.gmra.mxu0 %v119
    %v1677 = vpop.f32.mrf.mxu0
    %v1678 = vadd.f32 %v1565, %v1677
    %1679 = vmatmul.f32.gmra.mxu0 %v121
    %v1680 = vpop.f32.mrf.mxu0
    %v1681 = vadd.f32 %v1568, %v1680
    %1682 = vmatmul.f32.gmra.mxu0 %v123
    %v1683 = vpop.f32.mrf.mxu0
    %v1684 = vadd.f32 %v1571, %v1683
    %1685 = vdwg.mxu0
    %1686 = vst [vmem:[#allocation8] sm:$0xff] %v461
    %1687 = vst [vmem:[#allocation8 + $0x8] sm:$0xff] %v687
    %1688 = vst [vmem:[#allocation8 + $0x10] sm:$0xff] %v913
    %1689 = vst [vmem:[#allocation8 + $0x18] sm:$0xff] %v1139
    %1690 = vst [vmem:[#allocation8 + $0x20] sm:$0xff] %v1365
    %1691 = vst [vmem:[#allocation8 + $0x28] sm:$0xff] %v1591
    %1692 = vst [vmem:[#allocation8 + $0x30] sm:$0xff] %v464
    %1693 = vst [vmem:[#allocation8 + $0x38] sm:$0xff] %v690
    %1694 = vst [vmem:[#allocation8 + $0x40] sm:$0xff] %v916
    %1695 = vst [vmem:[#allocation8 + $0x48] sm:$0xff] %v1142
    %1696 = vst [vmem:[#allocation8 + $0x50] sm:$0xff] %v1368
    %1697 = vst [vmem:[#allocation8 + $0x58] sm:$0xff] %v1594
    %1698 = vst [vmem:[#allocation8 + $0x60] sm:$0xff] %v467
    %1699 = vst [vmem:[#allocation8 + $0x68] sm:$0xff] %v693
    %1700 = vst [vmem:[#allocation8 + $0x70] sm:$0xff] %v919
    %1701 = vst [vmem:[#allocation8 + $0x78] sm:$0xff] %v1145
    %1702 = vst [vmem:[#allocation8 + $0x80] sm:$0xff] %v1371
    %1703 = vst [vmem:[#allocation8 + $0x88] sm:$0xff] %v1597
    %1704 = vst [vmem:[#allocation8 + $0x90] sm:$0xff] %v470
    %1705 = vst [vmem:[#allocation8 + $0x98] sm:$0xff] %v696
    %1706 = vst [vmem:[#allocation8 + $0xa0] sm:$0xff] %v922
    %1707 = vst [vmem:[#allocation8 + $0xa8] sm:$0xff] %v1148
    %1708 = vst [vmem:[#allocation8 + $0xb0] sm:$0xff] %v1374
    %1709 = vst [vmem:[#allocation8 + $0xb8] sm:$0xff] %v1600
    %1710 = vst [vmem:[#allocation8 + $0xc0] sm:$0xff] %v473
    %1711 = vst [vmem:[#allocation8 + $0xc8] sm:$0xff] %v699
    %1712 = vst [vmem:[#allocation8 + $0xd0] sm:$0xff] %v925
    %1713 = vst [vmem:[#allocation8 + $0xd8] sm:$0xff] %v1151
    %1714 = vst [vmem:[#allocation8 + $0xe0] sm:$0xff] %v1377
    %1715 = vst [vmem:[#allocation8 + $0xe8] sm:$0xff] %v1603
    %1716 = vst [vmem:[#allocation8 + $0xf0] sm:$0xff] %v476
    %1717 = vst [vmem:[#allocation8 + $0xf8] sm:$0xff] %v702
    %1718 = vst [vmem:[#allocation8 + $0x100] sm:$0xff] %v928
    %1719 = vst [vmem:[#allocation8 + $0x108] sm:$0xff] %v1154
    %1720 = vst [vmem:[#allocation8 + $0x110] sm:$0xff] %v1380
    %1721 = vst [vmem:[#allocation8 + $0x118] sm:$0xff] %v1606
    %1722 = vst [vmem:[#allocation8 + $0x120] sm:$0xff] %v479
    %1723 = vst [vmem:[#allocation8 + $0x128] sm:$0xff] %v705
    %1724 = vst [vmem:[#allocation8 + $0x130] sm:$0xff] %v931
    %1725 = vst [vmem:[#allocation8 + $0x138] sm:$0xff] %v1157
    %1726 = vst [vmem:[#allocation8 + $0x140] sm:$0xff] %v1383
    %1727 = vst [vmem:[#allocation8 + $0x148] sm:$0xff] %v1609
    %1728 = vst [vmem:[#allocation8 + $0x150] sm:$0xff] %v482
    %1729 = vst [vmem:[#allocation8 + $0x158] sm:$0xff] %v708
    %1730 = vst [vmem:[#allocation8 + $0x160] sm:$0xff] %v934
    %1731 = vst [vmem:[#allocation8 + $0x168] sm:$0xff] %v1160
    %1732 = vst [vmem:[#allocation8 + $0x170] sm:$0xff] %v1386
    %1733 = vst [vmem:[#allocation8 + $0x178] sm:$0xff] %v1612
    %1734 = vst [vmem:[#allocation8 + $0x180] sm:$0xff] %v485
    %1735 = vst [vmem:[#allocation8 + $0x188] sm:$0xff] %v711
    %1736 = vst [vmem:[#allocation8 + $0x190] sm:$0xff] %v937
    %1737 = vst [vmem:[#allocation8 + $0x198] sm:$0xff] %v1163
    %1738 = vst [vmem:[#allocation8 + $0x1a0] sm:$0xff] %v1389
    %1739 = vst [vmem:[#allocation8 + $0x1a8] sm:$0xff] %v1615
    %1740 = vst [vmem:[#allocation8 + $0x1b0] sm:$0xff] %v488
    %1741 = vst [vmem:[#allocation8 + $0x1b8] sm:$0xff] %v714
    %1742 = vst [vmem:[#allocation8 + $0x1c0] sm:$0xff] %v940
    %1743 = vst [vmem:[#allocation8 + $0x1c8] sm:$0xff] %v1166
    %1744 = vst [vmem:[#allocation8 + $0x1d0] sm:$0xff] %v1392
    %1745 = vst [vmem:[#allocation8 + $0x1d8] sm:$0xff] %v1618
    %1746 = vst [vmem:[#allocation8 + $0x1e0] sm:$0xff] %v491
    %1747 = vst [vmem:[#allocation8 + $0x1e8] sm:$0xff] %v717
    %1748 = vst [vmem:[#allocation8 + $0x1f0] sm:$0xff] %v943
    %1749 = vst [vmem:[#allocation8 + $0x1f8] sm:$0xff] %v1169
    %1750 = vst [vmem:[#allocation8 + $0x200] sm:$0xff] %v1395
    %1751 = vst [vmem:[#allocation8 + $0x208] sm:$0xff] %v1621
    %1752 = vst [vmem:[#allocation8 + $0x210] sm:$0xff] %v494
    %1753 = vst [vmem:[#allocation8 + $0x218] sm:$0xff] %v720
    %1754 = vst [vmem:[#allocation8 + $0x220] sm:$0xff] %v946
    %1755 = vst [vmem:[#allocation8 + $0x228] sm:$0xff] %v1172
    %1756 = vst [vmem:[#allocation8 + $0x230] sm:$0xff] %v1398
    %1757 = vst [vmem:[#allocation8 + $0x238] sm:$0xff] %v1624
    %1758 = vst [vmem:[#allocation8 + $0x240] sm:$0xff] %v497
    %1759 = vst [vmem:[#allocation8 + $0x248] sm:$0xff] %v723
    %1760 = vst [vmem:[#allocation8 + $0x250] sm:$0xff] %v949
    %1761 = vst [vmem:[#allocation8 + $0x258] sm:$0xff] %v1175
    %1762 = vst [vmem:[#allocation8 + $0x260] sm:$0xff] %v1401
    %1763 = vst [vmem:[#allocation8 + $0x268] sm:$0xff] %v1627
    %1764 = vst [vmem:[#allocation8 + $0x270] sm:$0xff] %v500
    %1765 = vst [vmem:[#allocation8 + $0x278] sm:$0xff] %v726
    %1766 = vst [vmem:[#allocation8 + $0x280] sm:$0xff] %v952
    %1767 = vst [vmem:[#allocation8 + $0x288] sm:$0xff] %v1178
    %1768 = vst [vmem:[#allocation8 + $0x290] sm:$0xff] %v1404
    %1769 = vst [vmem:[#allocation8 + $0x298] sm:$0xff] %v1630
    %1770 = vst [vmem:[#allocation8 + $0x2a0] sm:$0xff] %v503
    %1771 = vst [vmem:[#allocation8 + $0x2a8] sm:$0xff] %v729
    %1772 = vst [vmem:[#allocation8 + $0x2b0] sm:$0xff] %v955
    %1773 = vst [vmem:[#allocation8 + $0x2b8] sm:$0xff] %v1181
    %1774 = vst [vmem:[#allocation8 + $0x2c0] sm:$0xff] %v1407
    %1775 = vst [vmem:[#allocation8 + $0x2c8] sm:$0xff] %v1633
    %1776 = vst [vmem:[#allocation8 + $0x2d0] sm:$0xff] %v506
    %1777 = vst [vmem:[#allocation8 + $0x2d8] sm:$0xff] %v732
    %1778 = vst [vmem:[#allocation8 + $0x2e0] sm:$0xff] %v958
    %1779 = vst [vmem:[#allocation8 + $0x2e8] sm:$0xff] %v1184
    %1780 = vst [vmem:[#allocation8 + $0x2f0] sm:$0xff] %v1410
    %1781 = vst [vmem:[#allocation8 + $0x2f8] sm:$0xff] %v1636
    %1782 = vst [vmem:[#allocation8 + $0x300] sm:$0xff] %v509
    %1783 = vst [vmem:[#allocation8 + $0x308] sm:$0xff] %v735
    %1784 = vst [vmem:[#allocation8 + $0x310] sm:$0xff] %v961
    %1785 = vst [vmem:[#allocation8 + $0x318] sm:$0xff] %v1187
    %1786 = vst [vmem:[#allocation8 + $0x320] sm:$0xff] %v1413
    %1787 = vst [vmem:[#allocation8 + $0x328] sm:$0xff] %v1639
    %1788 = vst [vmem:[#allocation8 + $0x330] sm:$0xff] %v512
    %1789 = vst [vmem:[#allocation8 + $0x338] sm:$0xff] %v738
    %1790 = vst [vmem:[#allocation8 + $0x340] sm:$0xff] %v964
    %1791 = vst [vmem:[#allocation8 + $0x348] sm:$0xff] %v1190
    %1792 = vst [vmem:[#allocation8 + $0x350] sm:$0xff] %v1416
    %1793 = vst [vmem:[#allocation8 + $0x358] sm:$0xff] %v1642
    %1794 = vst [vmem:[#allocation8 + $0x360] sm:$0xff] %v515
    %1795 = vst [vmem:[#allocation8 + $0x368] sm:$0xff] %v741
    %1796 = vst [vmem:[#allocation8 + $0x370] sm:$0xff] %v967
    %1797 = vst [vmem:[#allocation8 + $0x378] sm:$0xff] %v1193
    %1798 = vst [vmem:[#allocation8 + $0x380] sm:$0xff] %v1419
    %1799 = vst [vmem:[#allocation8 + $0x388] sm:$0xff] %v1645
    %1800 = vst [vmem:[#allocation8 + $0x390] sm:$0xff] %v518
    %1801 = vst [vmem:[#allocation8 + $0x398] sm:$0xff] %v744
    %1802 = vst [vmem:[#allocation8 + $0x3a0] sm:$0xff] %v970
    %1803 = vst [vmem:[#allocation8 + $0x3a8] sm:$0xff] %v1196
    %1804 = vst [vmem:[#allocation8 + $0x3b0] sm:$0xff] %v1422
    %1805 = vst [vmem:[#allocation8 + $0x3b8] sm:$0xff] %v1648
    %1806 = vst [vmem:[#allocation8 + $0x3c0] sm:$0xff] %v521
    %1807 = vst [vmem:[#allocation8 + $0x3c8] sm:$0xff] %v747
    %1808 = vst [vmem:[#allocation8 + $0x3d0] sm:$0xff] %v973
    %1809 = vst [vmem:[#allocation8 + $0x3d8] sm:$0xff] %v1199
    %1810 = vst [vmem:[#allocation8 + $0x3e0] sm:$0xff] %v1425
    %1811 = vst [vmem:[#allocation8 + $0x3e8] sm:$0xff] %v1651
    %1812 = vst [vmem:[#allocation8 + $0x3f0] sm:$0xff] %v524
    %1813 = vst [vmem:[#allocation8 + $0x3f8] sm:$0xff] %v750
    %1814 = vst [vmem:[#allocation8 + $0x400] sm:$0xff] %v976
    %1815 = vst [vmem:[#allocation8 + $0x408] sm:$0xff] %v1202
    %1816 = vst [vmem:[#allocation8 + $0x410] sm:$0xff] %v1428
    %1817 = vst [vmem:[#allocation8 + $0x418] sm:$0xff] %v1654
    %1818 = vst [vmem:[#allocation8 + $0x420] sm:$0xff] %v527
    %1819 = vst [vmem:[#allocation8 + $0x428] sm:$0xff] %v753
    %1820 = vst [vmem:[#allocation8 + $0x430] sm:$0xff] %v979
    %1821 = vst [vmem:[#allocation8 + $0x438] sm:$0xff] %v1205
    %1822 = vst [vmem:[#allocation8 + $0x440] sm:$0xff] %v1431
    %1823 = vst [vmem:[#allocation8 + $0x448] sm:$0xff] %v1657
    %1824 = vst [vmem:[#allocation8 + $0x450] sm:$0xff] %v530
    %1825 = vst [vmem:[#allocation8 + $0x458] sm:$0xff] %v756
    %1826 = vst [vmem:[#allocation8 + $0x460] sm:$0xff] %v982
    %1827 = vst [vmem:[#allocation8 + $0x468] sm:$0xff] %v1208
    %1828 = vst [vmem:[#allocation8 + $0x470] sm:$0xff] %v1434
    %1829 = vst [vmem:[#allocation8 + $0x478] sm:$0xff] %v1660
    %1830 = vst [vmem:[#allocation8 + $0x480] sm:$0xff] %v533
    %1831 = vst [vmem:[#allocation8 + $0x488] sm:$0xff] %v759
    %1832 = vst [vmem:[#allocation8 + $0x490] sm:$0xff] %v985
    %1833 = vst [vmem:[#allocation8 + $0x498] sm:$0xff] %v1211
    %1834 = vst [vmem:[#allocation8 + $0x4a0] sm:$0xff] %v1437
    %1835 = vst [vmem:[#allocation8 + $0x4a8] sm:$0xff] %v1663
    %1836 = vst [vmem:[#allocation8 + $0x4b0] sm:$0xff] %v536
    %1837 = vst [vmem:[#allocation8 + $0x4b8] sm:$0xff] %v762
    %1838 = vst [vmem:[#allocation8 + $0x4c0] sm:$0xff] %v988
    %1839 = vst [vmem:[#allocation8 + $0x4c8] sm:$0xff] %v1214
    %1840 = vst [vmem:[#allocation8 + $0x4d0] sm:$0xff] %v1440
    %1841 = vst [vmem:[#allocation8 + $0x4d8] sm:$0xff] %v1666
    %1842 = vst [vmem:[#allocation8 + $0x4e0] sm:$0xff] %v539
    %1843 = vst [vmem:[#allocation8 + $0x4e8] sm:$0xff] %v765
    %1844 = vst [vmem:[#allocation8 + $0x4f0] sm:$0xff] %v991
    %1845 = vst [vmem:[#allocation8 + $0x4f8] sm:$0xff] %v1217
    %1846 = vst [vmem:[#allocation8 + $0x500] sm:$0xff] %v1443
    %1847 = vst [vmem:[#allocation8 + $0x508] sm:$0xff] %v1669
    %1848 = vst [vmem:[#allocation8 + $0x510] sm:$0xff] %v542
    %1849 = vst [vmem:[#allocation8 + $0x518] sm:$0xff] %v768
    %1850 = vst [vmem:[#allocation8 + $0x520] sm:$0xff] %v994
    %1851 = vst [vmem:[#allocation8 + $0x528] sm:$0xff] %v1220
    %1852 = vst [vmem:[#allocation8 + $0x530] sm:$0xff] %v1446
    %1853 = vst [vmem:[#allocation8 + $0x538] sm:$0xff] %v1672
    %1854 = vst [vmem:[#allocation8 + $0x540] sm:$0xff] %v545
    %1855 = vst [vmem:[#allocation8 + $0x548] sm:$0xff] %v771
    %1856 = vst [vmem:[#allocation8 + $0x550] sm:$0xff] %v997
    %1857 = vst [vmem:[#allocation8 + $0x558] sm:$0xff] %v1223
    %1858 = vst [vmem:[#allocation8 + $0x560] sm:$0xff] %v1449
    %1859 = vst [vmem:[#allocation8 + $0x568] sm:$0xff] %v1675
    %1860 = vst [vmem:[#allocation8 + $0x570] sm:$0xff] %v548
    %1861 = vst [vmem:[#allocation8 + $0x578] sm:$0xff] %v774
    %1862 = vst [vmem:[#allocation8 + $0x580] sm:$0xff] %v1000
    %1863 = vst [vmem:[#allocation8 + $0x588] sm:$0xff] %v1226
    %1864 = vst [vmem:[#allocation8 + $0x590] sm:$0xff] %v1452
    %1865 = vst [vmem:[#allocation8 + $0x598] sm:$0xff] %v1678
    %1866 = vst [vmem:[#allocation8 + $0x5a0] sm:$0xff] %v551
    %1867 = vst [vmem:[#allocation8 + $0x5a8] sm:$0xff] %v777
    %1868 = vst [vmem:[#allocation8 + $0x5b0] sm:$0xff] %v1003
    %1869 = vst [vmem:[#allocation8 + $0x5b8] sm:$0xff] %v1229
    %1870 = vst [vmem:[#allocation8 + $0x5c0] sm:$0xff] %v1455
    %1871 = vst [vmem:[#allocation8 + $0x5c8] sm:$0xff] %v1681
    %1872 = vst [vmem:[#allocation8 + $0x5d0] sm:$0xff] %v554
    %1873 = vst [vmem:[#allocation8 + $0x5d8] sm:$0xff] %v780
    %1874 = vst [vmem:[#allocation8 + $0x5e0] sm:$0xff] %v1006
    %1875 = vst [vmem:[#allocation8 + $0x5e8] sm:$0xff] %v1232
    %1876 = vst [vmem:[#allocation8 + $0x5f0] sm:$0xff] %v1458
    %1877 = vst [vmem:[#allocation8 + $0x5f8] sm:$0xff] %v1684
    // Predicated region
    $region26: #{tpu_custom_call.1} parent=1 // pred_check
      _
    $region27: #{tpu_custom_call.1} parent=1 // pred_check_branch
      %1879 = sbr.rel (0) target = $region29
    $region28: #{tpu_custom_call.1} parent=1 // pred_region
      %1881 = vsyncadd [#allocation4], 0
      %s1882 = sshll.u32 [#allocation8], 4
      %s1883 = int_to_ptr.vmem [resolvable:$true] %s1882
      %s1884 = sshll.u32 %s3, 4
      %s1885 = int_to_ptr.hbm [resolvable:$true] %s1884
      %1890 = dma.vmem_to_hbm [thread:$0]  %s1883, 24576, %s1885, [#allocation4], 768, 768, 48
    $region29: #{tpu_custom_call.1} parent=1 // pred_fallthru
      _
    // Predicated region
    $region30: #{tpu_custom_call.1} parent=1 // pred_check
      _
    $region31: #{tpu_custom_call.1} parent=1 // pred_check_branch
      %1892 = sbr.rel (0) target = $region33
    $region32: #{tpu_custom_call.1} parent=1 // pred_region
      %1894 = dma.done [#allocation4], 24576
    $region33: #{tpu_custom_call.1} parent=1 // pred_fallthru
      _
    %1895 = vsyncpa [#allocation3], 1
    %1896 = vsyncpa [#allocation6], 1
    %1897 = vsyncpa [#allocation4], 1

</llo_original>
